<compile_context>
chip_gen: v7x
topology: tpu7x:2x2x1
jax: 0.10.0
libtpu: 0.0.40
codegen_flags: <defaults>
</compile_context>

<pallas_src>
import functools

import jax
import jax.numpy as jnp
from jax.experimental import pallas as pl
from jax.experimental.pallas import tpu as pltpu


def seq2seq_kernel(
    ids_ref,        # (L, 1)   int32 input token ids
    proj_ref,       # (V, H)   f32  embedding @ enc_w_ih + enc_b   (gather+proj+bias fused)
    w_slab_ref,     # (H, 3H+2A+2) bf16  [enc_w_hh | attn_w_enc | dec_w_att | w_fused]
    vec_ref,        # (1, A+3H+4)  f32  [attn_b | dec_b | lin_b | init_tok | w_tok0 | w_tok1]
    out_seq_ref,    # (T, 2)   f32  output
    attn_map_ref,   # (T, L)   f32  output (attention map, PyTorch layout)
    enc_ref,        # (L, H)   f32  VMEM scratch: encoder outputs
    attn_col_ref,   # (L, T)   f32  VMEM scratch: attention-map columns
    *,
    A,
):
    L = ids_ref.shape[0]
    V, H = proj_ref.shape
    T = out_seq_ref.shape[0]
    f32 = jnp.float32
    bf16 = jnp.bfloat16

    # ---------------- hoisted weight / bias extraction (once) ----------------
    enc_w_hh = w_slab_ref[:, 0:H]                 # (H, H)      bf16
    attn_w_enc = w_slab_ref[:, H:H + A]           # (H, A)      bf16
    w_att = w_slab_ref[:, H + A:2 * H + A]        # (H, H)      bf16
    w_fused = w_slab_ref[:, 2 * H + A:]           # (H, A+H+2)  bf16  [attn_w_dec|dec_w_hh|lin_w]

    vec = vec_ref[...]
    attn_b = vec[:, 0:A]                          # (1, A)
    dec_b = vec[:, A:A + H]                       # (1, H)
    lin_b = vec[:, A + H:A + H + 2]               # (1, 2)
    init_tok = vec[:, A + H + 2:A + H + 4]        # (1, 2)
    w_tok0 = vec[:, A + H + 4:A + 2 * H + 4]      # (1, H)
    w_tok1 = vec[:, A + 2 * H + 4:A + 3 * H + 4]  # (1, H)

    # ------------- encoder input projection: gather fused into a one-hot matmul -------------
    # proj_ref already contains  embedding @ enc_w_ih + enc_b,  so one MXU op yields x_proj.
    onehot = (jax.lax.broadcasted_iota(jnp.int32, (L, V), 1) == ids_ref[...]).astype(f32)
    x_proj = jnp.dot(onehot, proj_ref[...], preferred_element_type=f32)          # (L, H)

    # ---------------- Encoder: vanilla tanh RNN over L steps ----------------
    h_b = jnp.zeros((1, H), bf16)
    for t in range(L):                       # small L -> fully unrolled, static indices
        h = jnp.tanh(x_proj[t:t + 1, :]
                     + jnp.dot(h_b, enc_w_hh, preferred_element_type=f32))       # (1, H) f32
        enc_ref[t:t + 1, :] = h              # incremental store (idle vst slot)
        h_b = h.astype(bf16)

    enc = enc_ref[...]                                                            # (L, H) f32
    # loop-invariant attention pieces (hoisted); attn_b folded in here
    enc_part_b = (jnp.dot(enc.astype(bf16), attn_w_enc, preferred_element_type=f32)
                  + attn_b)                                                       # (L, A)
    enc_norms = jnp.sqrt(jnp.sum(enc * enc, axis=1, keepdims=True))               # (L, 1)

    # identity mask used once, after the decoder loop, to turn columns into rows
    eye = (jax.lax.broadcasted_iota(jnp.int32, (L, L), 0)
           == jax.lax.broadcasted_iota(jnp.int32, (L, L), 1))

    # ---------------- Decoder: attention + tanh RNN cell + linear ----------------
    hidden = h_b                               # (1, H) bf16, last encoder hidden
    input_tok = init_tok                       # (1, 2) f32
    for t in range(T):
        # One fused MXU op per step over the previous hidden:
        #   lanes [0:A)       -> attention decoder projection (this step)
        #   lanes [A:A+H)     -> W_hh @ hidden term of the RNN cell (this step)
        #   lanes [A+H:A+H+2) -> linear output of the PREVIOUS step's new hidden
        fused = jnp.dot(hidden, w_fused, preferred_element_type=f32)             # (1, A+H+2)
        if t > 0:
            out_tok = fused[:, A + H:] + lin_b                                    # (1, 2)
            out_seq_ref[t - 1:t, :] = out_tok        # incremental output store
            input_tok = out_tok                      # teacher-free feedback
        dec_part = fused[:, 0:A]                                                  # (1, A)
        # Everything of the cell pre-activation that does NOT depend on `attended`
        # is assembled off the critical chain (dec_b folded in; K=2 token matmul as VPU FMAs).
        pre_rest = (fused[:, A:A + H] + dec_b
                    + input_tok[:, 0:1] * w_tok0 + input_tok[:, 1:2] * w_tok1)    # (1, H)

        # EncoderDecoderAttn (critical chain). No max-subtraction: |s| <= A (tanh-bounded),
        # so exp() cannot overflow in f32; re-add the max if A grows large.
        a = jnp.tanh(dec_part + enc_part_b)                                       # (L, A)
        s = jnp.sum(a, axis=1, keepdims=True)                                     # (L, 1)
        p = jnp.exp(s)
        w = p * pl.reciprocal(jnp.sum(p, axis=0, keepdims=True), approx=True)     # (L, 1)
        attended = jnp.sum(w * enc, axis=0, keepdims=True)                        # (1, H)
        # attention-map column store (off chain; converted to rows after the loop)
        attn_col_ref[:, t:t + 1] = w * enc_norms

        att_term = jnp.dot(attended.astype(bf16), w_att, preferred_element_type=f32)
        hidden = jnp.tanh(att_term + pre_rest).astype(bf16)                       # (1, H)

    # cleanup: linear output of the last step's hidden
    fused = jnp.dot(hidden, w_fused, preferred_element_type=f32)
    out_seq_ref[T - 1:T, :] = fused[:, A + H:] + lin_b

    # (L, T) columns -> (T, L) rows, once, after the serial loop (no per-step XLU contention)
    cols = attn_col_ref[...]
    for t in range(T):
        attn_map_ref[t:t + 1, :] = jnp.sum(
            jnp.where(eye, cols[:, t:t + 1], 0.0), axis=0, keepdims=True)


def init_params(key, vocab, E, H, A):
    """All parameters uniform(-0.08, 0.08), matching the PyTorch init loop."""
    def u(k, shape):
        return jax.random.uniform(k, shape, jnp.float32, -0.08, 0.08)
    ks = jax.random.split(key, 14)
    return dict(
        embedding=u(ks[0], (vocab, E)),
        enc_w_ih=u(ks[1], (E, H)),
        enc_w_hh=u(ks[2], (H, H)),
        enc_b=u(ks[3], (1, H)),        # b_ih + b_hh folded (synthetic init)
        attn_w_dec=u(ks[4], (H, A)),
        attn_w_enc=u(ks[5], (H, A)),
        attn_b=u(ks[6], (1, A)),
        dec_w_tok=u(ks[7], (2, H)),
        dec_w_att=u(ks[8], (H, H)),
        dec_w_hh=u(ks[9], (H, H)),
        dec_b=u(ks[10], (1, H)),       # b_ih + b_hh folded (synthetic init)
        lin_w=u(ks[11], (H, 2)),
        lin_b=u(ks[12], (1, 2)),
        init_tok=u(ks[13], (1, 2)),
    )


def prepare_params(params):
    """One-time, call-invariant parameter packing (runs outside the jitted forward).

    * proj_table = embedding @ enc_w_ih + enc_b   (gather + input projection + bias fused)
    * w_slab     = [enc_w_hh | attn_w_enc | dec_w_att | attn_w_dec | dec_w_hh | lin_w]  bf16
    * vec_slab   = [attn_b | dec_b | lin_b | init_tok | dec_w_tok row0 | dec_w_tok row1] f32
    """
    proj_table = (params["embedding"].astype(jnp.float32) @ params["enc_w_ih"]
                  + params["enc_b"]).astype(jnp.float32)                      # (V, H)
    w_slab = jnp.concatenate(
        [params["enc_w_hh"], params["attn_w_enc"], params["dec_w_att"],
         params["attn_w_dec"], params["dec_w_hh"], params["lin_w"]],
        axis=1).astype(jnp.bfloat16)                                          # (H, 3H+2A+2)
    vec_slab = jnp.concatenate(
        [params["attn_b"], params["dec_b"], params["lin_b"], params["init_tok"],
         params["dec_w_tok"][0:1, :], params["dec_w_tok"][1:2, :]],
        axis=1).astype(jnp.float32)                                           # (1, A+3H+4)
    return dict(proj_table=proj_table, w_slab=w_slab, vec_slab=vec_slab)


@functools.partial(jax.jit, static_argnames=("target_length",))
def seq2seq_forward(prepared, input_seq, target_length):
    proj_table = prepared["proj_table"]
    w_slab = prepared["w_slab"]
    vec_slab = prepared["vec_slab"]

    L = input_seq.shape[0]
    T = int(target_length)
    H = w_slab.shape[0]
    A = vec_slab.shape[1] - 3 * H - 4           # vec_slab layout: A + 3H + 4 lanes

    ids = input_seq.reshape(L, 1).astype(jnp.int32)
    kernel = functools.partial(seq2seq_kernel, A=A)
    vmem = lambda: pl.BlockSpec(memory_space=pltpu.MemorySpace.VMEM)

    out_seq, attn_map = pl.pallas_call(
        kernel,
        out_shape=(
            jax.ShapeDtypeStruct((T, 2), jnp.float32),
            jax.ShapeDtypeStruct((T, L), jnp.float32),
        ),
        in_specs=[vmem(), vmem(), vmem(), vmem()],
        out_specs=(vmem(), vmem()),
        scratch_shapes=[
            pltpu.VMEM((L, H), jnp.float32),    # encoder outputs
            pltpu.VMEM((L, T), jnp.float32),    # attention-map columns
        ],
    )(ids, proj_table, w_slab, vec_slab)

    # attn_map is already in the PyTorch (target_length, input_length) layout
    return out_seq, attn_map


if __name__ == "__main__":
    VOCAB, E, H, A = 16, 32, 32, 32   # seg_embed_size = hidden_size = attn_size = 32
    L, T = 8, 8                       # input sequence length, target sequence length

    key = jax.random.PRNGKey(0)
    pkey, ikey = jax.random.split(key)
    params = init_params(pkey, VOCAB, E, H, A)
    prepared = prepare_params(params)            # one-time packing, outside the jitted forward

    input_seq = jax.random.randint(ikey, (L,), 0, VOCAB, dtype=jnp.int32)
    target_seq = jnp.zeros((T, 2), jnp.float32)  # only its length is used (as in PyTorch)

    out_seq, attn_map_seq = seq2seq_forward(prepared, input_seq, target_seq.shape[0])
    jax.block_until_ready((out_seq, attn_map_seq))

    assert out_seq.shape == (T, 2), out_seq.shape
    assert attn_map_seq.shape == (T, L), attn_map_seq.shape
    assert bool(jnp.all(jnp.isfinite(out_seq))) and bool(jnp.all(jnp.isfinite(attn_map_seq)))
    print("KERNEL_OK")
</pallas_src>

<mosaic_0001>
module attributes {stable_mosaic.version = 11 : i64} {
  func.func @seq2seq_kernel(%arg0: memref<8x1xi32, #tpu.memory_space<vmem>>, %arg1: memref<16x32xf32, #tpu.memory_space<vmem>>, %arg2: memref<32x162xbf16, #tpu.memory_space<vmem>>, %arg3: memref<1x132xf32, #tpu.memory_space<vmem>>, %arg4: memref<8x2xf32, #tpu.memory_space<vmem>>, %arg5: memref<8x8xf32, #tpu.memory_space<vmem>>, %arg6: memref<8x32xf32, #tpu.memory_space<vmem>>, %arg7: memref<8x8xf32, #tpu.memory_space<vmem>>) attributes {dimension_semantics = [], scalar_prefetch = 0 : i64, scratch_operands = 2 : i64, tpu.core_type = #tpu.core_type<tc>} {
    %c0 = arith.constant 0 : index
    %c0_0 = arith.constant 0 : index
    %0 = vector.load %arg2[%c0, %c0_0] : memref<32x162xbf16, #tpu.memory_space<vmem>>, vector<32x32xbf16>
    %c0_1 = arith.constant 0 : index
    %c32 = arith.constant 32 : index
    %1 = vector.load %arg2[%c0_1, %c32] : memref<32x162xbf16, #tpu.memory_space<vmem>>, vector<32x32xbf16>
    %c0_2 = arith.constant 0 : index
    %c64 = arith.constant 64 : index
    %2 = vector.load %arg2[%c0_2, %c64] : memref<32x162xbf16, #tpu.memory_space<vmem>>, vector<32x32xbf16>
    %c0_3 = arith.constant 0 : index
    %c96 = arith.constant 96 : index
    %3 = vector.load %arg2[%c0_3, %c96] : memref<32x162xbf16, #tpu.memory_space<vmem>>, vector<32x66xbf16>
    %c0_4 = arith.constant 0 : index
    %c0_5 = arith.constant 0 : index
    %4 = vector.load %arg3[%c0_4, %c0_5] : memref<1x132xf32, #tpu.memory_space<vmem>>, vector<1x132xf32>
    %5 = vector.extract_strided_slice %4 {offsets = [0, 0], sizes = [1, 32], strides = [1, 1]} : vector<1x132xf32> to vector<1x32xf32>
    %6 = vector.extract_strided_slice %4 {offsets = [0, 32], sizes = [1, 32], strides = [1, 1]} : vector<1x132xf32> to vector<1x32xf32>
    %7 = vector.extract_strided_slice %4 {offsets = [0, 64], sizes = [1, 2], strides = [1, 1]} : vector<1x132xf32> to vector<1x2xf32>
    %8 = vector.extract_strided_slice %4 {offsets = [0, 66], sizes = [1, 2], strides = [1, 1]} : vector<1x132xf32> to vector<1x2xf32>
    %9 = vector.extract_strided_slice %4 {offsets = [0, 68], sizes = [1, 32], strides = [1, 1]} : vector<1x132xf32> to vector<1x32xf32>
    %10 = vector.extract_strided_slice %4 {offsets = [0, 100], sizes = [1, 32], strides = [1, 1]} : vector<1x132xf32> to vector<1x32xf32>
    %11 = tpu.iota {dimensions = array<i32: 1>} : vector<8x16xi32>
    %c0_6 = arith.constant 0 : index
    %c0_7 = arith.constant 0 : index
    %12 = vector.load %arg0[%c0_6, %c0_7] : memref<8x1xi32, #tpu.memory_space<vmem>>, vector<8x1xi32>
    %13 = vector.broadcast %12 : vector<8x1xi32> to vector<8x16xi32>
    %14 = arith.cmpi eq, %11, %13 : vector<8x16xi32>
    %15 = arith.extui %14 : vector<8x16xi1> to vector<8x16xi32>
    %16 = arith.sitofp %15 : vector<8x16xi32> to vector<8x16xf32>
    %c0_8 = arith.constant 0 : index
    %c0_9 = arith.constant 0 : index
    %17 = vector.load %arg1[%c0_8, %c0_9] : memref<16x32xf32, #tpu.memory_space<vmem>>, vector<16x32xf32>
    %cst = arith.constant dense<0.000000e+00> : vector<8x32xf32>
    %18 = tpu.matmul %16, %17, %cst {dimension_numbers = #tpu.dot_dimension_numbers<[1], [0], [0], [1], [0, 0, 1, 1], [], []>} : vector<8x16xf32>, vector<16x32xf32>, vector<8x32xf32> -> vector<8x32xf32>
    %cst_10 = arith.constant 0.000000e+00 : bf16
    %19 = vector.broadcast %cst_10 : bf16 to vector<1x32xbf16>
    %20 = vector.extract_strided_slice %18 {offsets = [0, 0], sizes = [1, 32], strides = [1, 1]} : vector<8x32xf32> to vector<1x32xf32>
    %cst_11 = arith.constant dense<0.000000e+00> : vector<1x32xf32>
    %21 = tpu.matmul %19, %0, %cst_11 {dimension_numbers = #tpu.dot_dimension_numbers<[1], [0], [0], [1], [0, 0, 1, 1], [], []>} : vector<1x32xbf16>, vector<32x32xbf16>, vector<1x32xf32> -> vector<1x32xf32>
    %22 = arith.addf %20, %21 : vector<1x32xf32>
    %23 = math.tanh %22 : vector<1x32xf32>
    %c0_12 = arith.constant 0 : index
    %c0_13 = arith.constant 0 : index
    %24 = vector.load %arg6[%c0_12, %c0_13] : memref<8x32xf32, #tpu.memory_space<vmem>>, vector<1x32xf32>
    tpu.vector_store %arg6[%c0_12, %c0_13], %23 {strides = array<i32>} : memref<8x32xf32, #tpu.memory_space<vmem>>, vector<1x32xf32>,
    %25 = arith.truncf %23 : vector<1x32xf32> to vector<1x32xbf16>
    %26 = vector.extract_strided_slice %18 {offsets = [1, 0], sizes = [1, 32], strides = [1, 1]} : vector<8x32xf32> to vector<1x32xf32>
    %cst_14 = arith.constant dense<0.000000e+00> : vector<1x32xf32>
    %27 = tpu.matmul %25, %0, %cst_14 {dimension_numbers = #tpu.dot_dimension_numbers<[1], [0], [0], [1], [0, 0, 1, 1], [], []>} : vector<1x32xbf16>, vector<32x32xbf16>, vector<1x32xf32> -> vector<1x32xf32>
    %28 = arith.addf %26, %27 : vector<1x32xf32>
    %29 = math.tanh %28 : vector<1x32xf32>
    %c1 = arith.constant 1 : index
    %c0_15 = arith.constant 0 : index
    %30 = vector.load %arg6[%c1, %c0_15] : memref<8x32xf32, #tpu.memory_space<vmem>>, vector<1x32xf32>
    tpu.vector_store %arg6[%c1, %c0_15], %29 {strides = array<i32>} : memref<8x32xf32, #tpu.memory_space<vmem>>, vector<1x32xf32>,
    %31 = arith.truncf %29 : vector<1x32xf32> to vector<1x32xbf16>
    %32 = vector.extract_strided_slice %18 {offsets = [2, 0], sizes = [1, 32], strides = [1, 1]} : vector<8x32xf32> to vector<1x32xf32>
    %cst_16 = arith.constant dense<0.000000e+00> : vector<1x32xf32>
    %33 = tpu.matmul %31, %0, %cst_16 {dimension_numbers = #tpu.dot_dimension_numbers<[1], [0], [0], [1], [0, 0, 1, 1], [], []>} : vector<1x32xbf16>, vector<32x32xbf16>, vector<1x32xf32> -> vector<1x32xf32>
    %34 = arith.addf %32, %33 : vector<1x32xf32>
    %35 = math.tanh %34 : vector<1x32xf32>
    %c2 = arith.constant 2 : index
    %c0_17 = arith.constant 0 : index
    %36 = vector.load %arg6[%c2, %c0_17] : memref<8x32xf32, #tpu.memory_space<vmem>>, vector<1x32xf32>
    tpu.vector_store %arg6[%c2, %c0_17], %35 {strides = array<i32>} : memref<8x32xf32, #tpu.memory_space<vmem>>, vector<1x32xf32>,
    %37 = arith.truncf %35 : vector<1x32xf32> to vector<1x32xbf16>
    %38 = vector.extract_strided_slice %18 {offsets = [3, 0], sizes = [1, 32], strides = [1, 1]} : vector<8x32xf32> to vector<1x32xf32>
    %cst_18 = arith.constant dense<0.000000e+00> : vector<1x32xf32>
    %39 = tpu.matmul %37, %0, %cst_18 {dimension_numbers = #tpu.dot_dimension_numbers<[1], [0], [0], [1], [0, 0, 1, 1], [], []>} : vector<1x32xbf16>, vector<32x32xbf16>, vector<1x32xf32> -> vector<1x32xf32>
    %40 = arith.addf %38, %39 : vector<1x32xf32>
    %41 = math.tanh %40 : vector<1x32xf32>
    %c3 = arith.constant 3 : index
    %c0_19 = arith.constant 0 : index
    %42 = vector.load %arg6[%c3, %c0_19] : memref<8x32xf32, #tpu.memory_space<vmem>>, vector<1x32xf32>
    tpu.vector_store %arg6[%c3, %c0_19], %41 {strides = array<i32>} : memref<8x32xf32, #tpu.memory_space<vmem>>, vector<1x32xf32>,
    %43 = arith.truncf %41 : vector<1x32xf32> to vector<1x32xbf16>
    %44 = vector.extract_strided_slice %18 {offsets = [4, 0], sizes = [1, 32], strides = [1, 1]} : vector<8x32xf32> to vector<1x32xf32>
    %cst_20 = arith.constant dense<0.000000e+00> : vector<1x32xf32>
    %45 = tpu.matmul %43, %0, %cst_20 {dimension_numbers = #tpu.dot_dimension_numbers<[1], [0], [0], [1], [0, 0, 1, 1], [], []>} : vector<1x32xbf16>, vector<32x32xbf16>, vector<1x32xf32> -> vector<1x32xf32>
    %46 = arith.addf %44, %45 : vector<1x32xf32>
    %47 = math.tanh %46 : vector<1x32xf32>
    %c4 = arith.constant 4 : index
    %c0_21 = arith.constant 0 : index
    %48 = vector.load %arg6[%c4, %c0_21] : memref<8x32xf32, #tpu.memory_space<vmem>>, vector<1x32xf32>
    tpu.vector_store %arg6[%c4, %c0_21], %47 {strides = array<i32>} : memref<8x32xf32, #tpu.memory_space<vmem>>, vector<1x32xf32>,
    %49 = arith.truncf %47 : vector<1x32xf32> to vector<1x32xbf16>
    %50 = vector.extract_strided_slice %18 {offsets = [5, 0], sizes = [1, 32], strides = [1, 1]} : vector<8x32xf32> to vector<1x32xf32>
    %cst_22 = arith.constant dense<0.000000e+00> : vector<1x32xf32>
    %51 = tpu.matmul %49, %0, %cst_22 {dimension_numbers = #tpu.dot_dimension_numbers<[1], [0], [0], [1], [0, 0, 1, 1], [], []>} : vector<1x32xbf16>, vector<32x32xbf16>, vector<1x32xf32> -> vector<1x32xf32>
    %52 = arith.addf %50, %51 : vector<1x32xf32>
    %53 = math.tanh %52 : vector<1x32xf32>
    %c5 = arith.constant 5 : index
    %c0_23 = arith.constant 0 : index
    %54 = vector.load %arg6[%c5, %c0_23] : memref<8x32xf32, #tpu.memory_space<vmem>>, vector<1x32xf32>
    tpu.vector_store %arg6[%c5, %c0_23], %53 {strides = array<i32>} : memref<8x32xf32, #tpu.memory_space<vmem>>, vector<1x32xf32>,
    %55 = arith.truncf %53 : vector<1x32xf32> to vector<1x32xbf16>
    %56 = vector.extract_strided_slice %18 {offsets = [6, 0], sizes = [1, 32], strides = [1, 1]} : vector<8x32xf32> to vector<1x32xf32>
    %cst_24 = arith.constant dense<0.000000e+00> : vector<1x32xf32>
    %57 = tpu.matmul %55, %0, %cst_24 {dimension_numbers = #tpu.dot_dimension_numbers<[1], [0], [0], [1], [0, 0, 1, 1], [], []>} : vector<1x32xbf16>, vector<32x32xbf16>, vector<1x32xf32> -> vector<1x32xf32>
    %58 = arith.addf %56, %57 : vector<1x32xf32>
    %59 = math.tanh %58 : vector<1x32xf32>
    %c6 = arith.constant 6 : index
    %c0_25 = arith.constant 0 : index
    %60 = vector.load %arg6[%c6, %c0_25] : memref<8x32xf32, #tpu.memory_space<vmem>>, vector<1x32xf32>
    tpu.vector_store %arg6[%c6, %c0_25], %59 {strides = array<i32>} : memref<8x32xf32, #tpu.memory_space<vmem>>, vector<1x32xf32>,
    %61 = arith.truncf %59 : vector<1x32xf32> to vector<1x32xbf16>
    %62 = vector.extract_strided_slice %18 {offsets = [7, 0], sizes = [1, 32], strides = [1, 1]} : vector<8x32xf32> to vector<1x32xf32>
    %cst_26 = arith.constant dense<0.000000e+00> : vector<1x32xf32>
    %63 = tpu.matmul %61, %0, %cst_26 {dimension_numbers = #tpu.dot_dimension_numbers<[1], [0], [0], [1], [0, 0, 1, 1], [], []>} : vector<1x32xbf16>, vector<32x32xbf16>, vector<1x32xf32> -> vector<1x32xf32>
    %64 = arith.addf %62, %63 : vector<1x32xf32>
    %65 = math.tanh %64 : vector<1x32xf32>
    %c7 = arith.constant 7 : index
    %c0_27 = arith.constant 0 : index
    %66 = vector.load %arg6[%c7, %c0_27] : memref<8x32xf32, #tpu.memory_space<vmem>>, vector<1x32xf32>
    tpu.vector_store %arg6[%c7, %c0_27], %65 {strides = array<i32>} : memref<8x32xf32, #tpu.memory_space<vmem>>, vector<1x32xf32>,
    %67 = arith.truncf %65 : vector<1x32xf32> to vector<1x32xbf16>
    %c0_28 = arith.constant 0 : index
    %c0_29 = arith.constant 0 : index
    %68 = vector.load %arg6[%c0_28, %c0_29] : memref<8x32xf32, #tpu.memory_space<vmem>>, vector<8x32xf32>
    %69 = arith.truncf %68 : vector<8x32xf32> to vector<8x32xbf16>
    %cst_30 = arith.constant dense<0.000000e+00> : vector<8x32xf32>
    %70 = tpu.matmul %69, %1, %cst_30 {dimension_numbers = #tpu.dot_dimension_numbers<[1], [0], [0], [1], [0, 0, 1, 1], [], []>} : vector<8x32xbf16>, vector<32x32xbf16>, vector<8x32xf32> -> vector<8x32xf32>
    %71 = vector.broadcast %5 : vector<1x32xf32> to vector<8x32xf32>
    %72 = arith.addf %70, %71 : vector<8x32xf32>
    %73 = arith.mulf %68, %68 : vector<8x32xf32>
    %cst_31 = arith.constant dense<0.000000e+00> : vector<8xf32>
    %74 = vector.multi_reduction <add>, %73, %cst_31 [1] : vector<8x32xf32> to vector<8xf32>
    %75 = vector.shape_cast %74 : vector<8xf32> to vector<8x1xf32>
    %76 = math.sqrt %75 : vector<8x1xf32>
    %77 = tpu.iota {dimensions = array<i32: 0>} : vector<8x8xi32>
    %78 = tpu.iota {dimensions = array<i32: 1>} : vector<8x8xi32>
    %79 = arith.cmpi eq, %77, %78 : vector<8x8xi32>
    %cst_32 = arith.constant dense<0.000000e+00> : vector<1x66xf32>
    %80 = tpu.matmul %67, %3, %cst_32 {dimension_numbers = #tpu.dot_dimension_numbers<[1], [0], [0], [1], [0, 0, 1, 1], [], []>} : vector<1x32xbf16>, vector<32x66xbf16>, vector<1x66xf32> -> vector<1x66xf32>
    %81 = vector.extract_strided_slice %80 {offsets = [0, 0], sizes = [1, 32], strides = [1, 1]} : vector<1x66xf32> to vector<1x32xf32>
    %82 = vector.extract_strided_slice %80 {offsets = [0, 32], sizes = [1, 32], strides = [1, 1]} : vector<1x66xf32> to vector<1x32xf32>
    %83 = arith.addf %82, %6 : vector<1x32xf32>
    %84 = vector.extract_strided_slice %8 {offsets = [0, 0], sizes = [1, 1], strides = [1, 1]} : vector<1x2xf32> to vector<1x1xf32>
    %85 = vector.broadcast %84 : vector<1x1xf32> to vector<1x32xf32>
    %86 = arith.mulf %85, %9 : vector<1x32xf32>
    %87 = arith.addf %83, %86 : vector<1x32xf32>
    %88 = vector.extract_strided_slice %8 {offsets = [0, 1], sizes = [1, 1], strides = [1, 1]} : vector<1x2xf32> to vector<1x1xf32>
    %89 = vector.broadcast %88 : vector<1x1xf32> to vector<1x32xf32>
    %90 = arith.mulf %89, %10 : vector<1x32xf32>
    %91 = arith.addf %87, %90 : vector<1x32xf32>
    %92 = vector.broadcast %81 : vector<1x32xf32> to vector<8x32xf32>
    %93 = arith.addf %92, %72 : vector<8x32xf32>
    %94 = math.tanh %93 : vector<8x32xf32>
    %cst_33 = arith.constant dense<0.000000e+00> : vector<8xf32>
    %95 = vector.multi_reduction <add>, %94, %cst_33 [1] : vector<8x32xf32> to vector<8xf32>
    %96 = vector.shape_cast %95 : vector<8xf32> to vector<8x1xf32>
    %97 = math.exp %96 : vector<8x1xf32>
    %cst_34 = arith.constant dense<0.000000e+00> : vector<1xf32>
    %98 = vector.multi_reduction <add>, %97, %cst_34 [0] : vector<8x1xf32> to vector<1xf32>
    %99 = vector.shape_cast %98 : vector<1xf32> to vector<1x1xf32>
    %100 = tpu.reciprocal %99 {approx = true} : vector<1x1xf32> -> vector<1x1xf32>
    %101 = vector.broadcast %100 : vector<1x1xf32> to vector<8x1xf32>
    %102 = arith.mulf %97, %101 : vector<8x1xf32>
    %103 = vector.broadcast %102 : vector<8x1xf32> to vector<8x32xf32>
    %104 = arith.mulf %103, %68 : vector<8x32xf32>
    %cst_35 = arith.constant dense<0.000000e+00> : vector<32xf32>
    %105 = vector.multi_reduction <add>, %104, %cst_35 [0] : vector<8x32xf32> to vector<32xf32>
    %106 = vector.shape_cast %105 : vector<32xf32> to vector<1x32xf32>
    %107 = arith.mulf %102, %76 : vector<8x1xf32>
    %c0_36 = arith.constant 0 : index
    %c0_37 = arith.constant 0 : index
    %108 = vector.load %arg7[%c0_36, %c0_37] : memref<8x8xf32, #tpu.memory_space<vmem>>, vector<8x1xf32>
    tpu.vector_store %arg7[%c0_36, %c0_37], %107 {strides = array<i32>} : memref<8x8xf32, #tpu.memory_space<vmem>>, vector<8x1xf32>,
    %109 = arith.truncf %106 : vector<1x32xf32> to vector<1x32xbf16>
    %cst_38 = arith.constant dense<0.000000e+00> : vector<1x32xf32>
    %110 = tpu.matmul %109, %2, %cst_38 {dimension_numbers = #tpu.dot_dimension_numbers<[1], [0], [0], [1], [0, 0, 1, 1], [], []>} : vector<1x32xbf16>, vector<32x32xbf16>, vector<1x32xf32> -> vector<1x32xf32>
    %111 = arith.addf %110, %91 : vector<1x32xf32>
    %112 = math.tanh %111 : vector<1x32xf32>
    %113 = arith.truncf %112 : vector<1x32xf32> to vector<1x32xbf16>
    %cst_39 = arith.constant dense<0.000000e+00> : vector<1x66xf32>
    %114 = tpu.matmul %113, %3, %cst_39 {dimension_numbers = #tpu.dot_dimension_numbers<[1], [0], [0], [1], [0, 0, 1, 1], [], []>} : vector<1x32xbf16>, vector<32x66xbf16>, vector<1x66xf32> -> vector<1x66xf32>
    %115 = vector.extract_strided_slice %114 {offsets = [0, 64], sizes = [1, 2], strides = [1, 1]} : vector<1x66xf32> to vector<1x2xf32>
    %116 = arith.addf %115, %7 : vector<1x2xf32>
    %c0_40 = arith.constant 0 : index
    %c0_41 = arith.constant 0 : index
    %117 = vector.load %arg4[%c0_40, %c0_41] : memref<8x2xf32, #tpu.memory_space<vmem>>, vector<1x2xf32>
    tpu.vector_store %arg4[%c0_40, %c0_41], %116 {strides = array<i32>} : memref<8x2xf32, #tpu.memory_space<vmem>>, vector<1x2xf32>,
    %118 = vector.extract_strided_slice %114 {offsets = [0, 0], sizes = [1, 32], strides = [1, 1]} : vector<1x66xf32> to vector<1x32xf32>
    %119 = vector.extract_strided_slice %114 {offsets = [0, 32], sizes = [1, 32], strides = [1, 1]} : vector<1x66xf32> to vector<1x32xf32>
    %120 = arith.addf %119, %6 : vector<1x32xf32>
    %121 = vector.extract_strided_slice %116 {offsets = [0, 0], sizes = [1, 1], strides = [1, 1]} : vector<1x2xf32> to vector<1x1xf32>
    %122 = vector.broadcast %121 : vector<1x1xf32> to vector<1x32xf32>
    %123 = arith.mulf %122, %9 : vector<1x32xf32>
    %124 = arith.addf %120, %123 : vector<1x32xf32>
    %125 = vector.extract_strided_slice %116 {offsets = [0, 1], sizes = [1, 1], strides = [1, 1]} : vector<1x2xf32> to vector<1x1xf32>
    %126 = vector.broadcast %125 : vector<1x1xf32> to vector<1x32xf32>
    %127 = arith.mulf %126, %10 : vector<1x32xf32>
    %128 = arith.addf %124, %127 : vector<1x32xf32>
    %129 = vector.broadcast %118 : vector<1x32xf32> to vector<8x32xf32>
    %130 = arith.addf %129, %72 : vector<8x32xf32>
    %131 = math.tanh %130 : vector<8x32xf32>
    %cst_42 = arith.constant dense<0.000000e+00> : vector<8xf32>
    %132 = vector.multi_reduction <add>, %131, %cst_42 [1] : vector<8x32xf32> to vector<8xf32>
    %133 = vector.shape_cast %132 : vector<8xf32> to vector<8x1xf32>
    %134 = math.exp %133 : vector<8x1xf32>
    %cst_43 = arith.constant dense<0.000000e+00> : vector<1xf32>
    %135 = vector.multi_reduction <add>, %134, %cst_43 [0] : vector<8x1xf32> to vector<1xf32>
    %136 = vector.shape_cast %135 : vector<1xf32> to vector<1x1xf32>
    %137 = tpu.reciprocal %136 {approx = true} : vector<1x1xf32> -> vector<1x1xf32>
    %138 = vector.broadcast %137 : vector<1x1xf32> to vector<8x1xf32>
    %139 = arith.mulf %134, %138 : vector<8x1xf32>
    %140 = vector.broadcast %139 : vector<8x1xf32> to vector<8x32xf32>
    %141 = arith.mulf %140, %68 : vector<8x32xf32>
    %cst_44 = arith.constant dense<0.000000e+00> : vector<32xf32>
    %142 = vector.multi_reduction <add>, %141, %cst_44 [0] : vector<8x32xf32> to vector<32xf32>
    %143 = vector.shape_cast %142 : vector<32xf32> to vector<1x32xf32>
    %144 = arith.mulf %139, %76 : vector<8x1xf32>
    %c0_45 = arith.constant 0 : index
    %c1_46 = arith.constant 1 : index
    %145 = vector.load %arg7[%c0_45, %c1_46] : memref<8x8xf32, #tpu.memory_space<vmem>>, vector<8x1xf32>
    tpu.vector_store %arg7[%c0_45, %c1_46], %144 {strides = array<i32>} : memref<8x8xf32, #tpu.memory_space<vmem>>, vector<8x1xf32>,
    %146 = arith.truncf %143 : vector<1x32xf32> to vector<1x32xbf16>
    %cst_47 = arith.constant dense<0.000000e+00> : vector<1x32xf32>
    %147 = tpu.matmul %146, %2, %cst_47 {dimension_numbers = #tpu.dot_dimension_numbers<[1], [0], [0], [1], [0, 0, 1, 1], [], []>} : vector<1x32xbf16>, vector<32x32xbf16>, vector<1x32xf32> -> vector<1x32xf32>
    %148 = arith.addf %147, %128 : vector<1x32xf32>
    %149 = math.tanh %148 : vector<1x32xf32>
    %150 = arith.truncf %149 : vector<1x32xf32> to vector<1x32xbf16>
    %cst_48 = arith.constant dense<0.000000e+00> : vector<1x66xf32>
    %151 = tpu.matmul %150, %3, %cst_48 {dimension_numbers = #tpu.dot_dimension_numbers<[1], [0], [0], [1], [0, 0, 1, 1], [], []>} : vector<1x32xbf16>, vector<32x66xbf16>, vector<1x66xf32> -> vector<1x66xf32>
    %152 = vector.extract_strided_slice %151 {offsets = [0, 64], sizes = [1, 2], strides = [1, 1]} : vector<1x66xf32> to vector<1x2xf32>
    %153 = arith.addf %152, %7 : vector<1x2xf32>
    %c1_49 = arith.constant 1 : index
    %c0_50 = arith.constant 0 : index
    %154 = vector.load %arg4[%c1_49, %c0_50] : memref<8x2xf32, #tpu.memory_space<vmem>>, vector<1x2xf32>
    tpu.vector_store %arg4[%c1_49, %c0_50], %153 {strides = array<i32>} : memref<8x2xf32, #tpu.memory_space<vmem>>, vector<1x2xf32>,
    %155 = vector.extract_strided_slice %151 {offsets = [0, 0], sizes = [1, 32], strides = [1, 1]} : vector<1x66xf32> to vector<1x32xf32>
    %156 = vector.extract_strided_slice %151 {offsets = [0, 32], sizes = [1, 32], strides = [1, 1]} : vector<1x66xf32> to vector<1x32xf32>
    %157 = arith.addf %156, %6 : vector<1x32xf32>
    %158 = vector.extract_strided_slice %153 {offsets = [0, 0], sizes = [1, 1], strides = [1, 1]} : vector<1x2xf32> to vector<1x1xf32>
    %159 = vector.broadcast %158 : vector<1x1xf32> to vector<1x32xf32>
    %160 = arith.mulf %159, %9 : vector<1x32xf32>
    %161 = arith.addf %157, %160 : vector<1x32xf32>
    %162 = vector.extract_strided_slice %153 {offsets = [0, 1], sizes = [1, 1], strides = [1, 1]} : vector<1x2xf32> to vector<1x1xf32>
    %163 = vector.broadcast %162 : vector<1x1xf32> to vector<1x32xf32>
    %164 = arith.mulf %163, %10 : vector<1x32xf32>
    %165 = arith.addf %161, %164 : vector<1x32xf32>
    %166 = vector.broadcast %155 : vector<1x32xf32> to vector<8x32xf32>
    %167 = arith.addf %166, %72 : vector<8x32xf32>
    %168 = math.tanh %167 : vector<8x32xf32>
    %cst_51 = arith.constant dense<0.000000e+00> : vector<8xf32>
    %169 = vector.multi_reduction <add>, %168, %cst_51 [1] : vector<8x32xf32> to vector<8xf32>
    %170 = vector.shape_cast %169 : vector<8xf32> to vector<8x1xf32>
    %171 = math.exp %170 : vector<8x1xf32>
    %cst_52 = arith.constant dense<0.000000e+00> : vector<1xf32>
    %172 = vector.multi_reduction <add>, %171, %cst_52 [0] : vector<8x1xf32> to vector<1xf32>
    %173 = vector.shape_cast %172 : vector<1xf32> to vector<1x1xf32>
    %174 = tpu.reciprocal %173 {approx = true} : vector<1x1xf32> -> vector<1x1xf32>
    %175 = vector.broadcast %174 : vector<1x1xf32> to vector<8x1xf32>
    %176 = arith.mulf %171, %175 : vector<8x1xf32>
    %177 = vector.broadcast %176 : vector<8x1xf32> to vector<8x32xf32>
    %178 = arith.mulf %177, %68 : vector<8x32xf32>
    %cst_53 = arith.constant dense<0.000000e+00> : vector<32xf32>
    %179 = vector.multi_reduction <add>, %178, %cst_53 [0] : vector<8x32xf32> to vector<32xf32>
    %180 = vector.shape_cast %179 : vector<32xf32> to vector<1x32xf32>
    %181 = arith.mulf %176, %76 : vector<8x1xf32>
    %c0_54 = arith.constant 0 : index
    %c2_55 = arith.constant 2 : index
    %182 = vector.load %arg7[%c0_54, %c2_55] : memref<8x8xf32, #tpu.memory_space<vmem>>, vector<8x1xf32>
    tpu.vector_store %arg7[%c0_54, %c2_55], %181 {strides = array<i32>} : memref<8x8xf32, #tpu.memory_space<vmem>>, vector<8x1xf32>,
    %183 = arith.truncf %180 : vector<1x32xf32> to vector<1x32xbf16>
    %cst_56 = arith.constant dense<0.000000e+00> : vector<1x32xf32>
    %184 = tpu.matmul %183, %2, %cst_56 {dimension_numbers = #tpu.dot_dimension_numbers<[1], [0], [0], [1], [0, 0, 1, 1], [], []>} : vector<1x32xbf16>, vector<32x32xbf16>, vector<1x32xf32> -> vector<1x32xf32>
    %185 = arith.addf %184, %165 : vector<1x32xf32>
    %186 = math.tanh %185 : vector<1x32xf32>
    %187 = arith.truncf %186 : vector<1x32xf32> to vector<1x32xbf16>
    %cst_57 = arith.constant dense<0.000000e+00> : vector<1x66xf32>
    %188 = tpu.matmul %187, %3, %cst_57 {dimension_numbers = #tpu.dot_dimension_numbers<[1], [0], [0], [1], [0, 0, 1, 1], [], []>} : vector<1x32xbf16>, vector<32x66xbf16>, vector<1x66xf32> -> vector<1x66xf32>
    %189 = vector.extract_strided_slice %188 {offsets = [0, 64], sizes = [1, 2], strides = [1, 1]} : vector<1x66xf32> to vector<1x2xf32>
    %190 = arith.addf %189, %7 : vector<1x2xf32>
    %c2_58 = arith.constant 2 : index
    %c0_59 = arith.constant 0 : index
    %191 = vector.load %arg4[%c2_58, %c0_59] : memref<8x2xf32, #tpu.memory_space<vmem>>, vector<1x2xf32>
    tpu.vector_store %arg4[%c2_58, %c0_59], %190 {strides = array<i32>} : memref<8x2xf32, #tpu.memory_space<vmem>>, vector<1x2xf32>,
    %192 = vector.extract_strided_slice %188 {offsets = [0, 0], sizes = [1, 32], strides = [1, 1]} : vector<1x66xf32> to vector<1x32xf32>
    %193 = vector.extract_strided_slice %188 {offsets = [0, 32], sizes = [1, 32], strides = [1, 1]} : vector<1x66xf32> to vector<1x32xf32>
    %194 = arith.addf %193, %6 : vector<1x32xf32>
    %195 = vector.extract_strided_slice %190 {offsets = [0, 0], sizes = [1, 1], strides = [1, 1]} : vector<1x2xf32> to vector<1x1xf32>
    %196 = vector.broadcast %195 : vector<1x1xf32> to vector<1x32xf32>
    %197 = arith.mulf %196, %9 : vector<1x32xf32>
    %198 = arith.addf %194, %197 : vector<1x32xf32>
    %199 = vector.extract_strided_slice %190 {offsets = [0, 1], sizes = [1, 1], strides = [1, 1]} : vector<1x2xf32> to vector<1x1xf32>
    %200 = vector.broadcast %199 : vector<1x1xf32> to vector<1x32xf32>
    %201 = arith.mulf %200, %10 : vector<1x32xf32>
    %202 = arith.addf %198, %201 : vector<1x32xf32>
    %203 = vector.broadcast %192 : vector<1x32xf32> to vector<8x32xf32>
    %204 = arith.addf %203, %72 : vector<8x32xf32>
    %205 = math.tanh %204 : vector<8x32xf32>
    %cst_60 = arith.constant dense<0.000000e+00> : vector<8xf32>
    %206 = vector.multi_reduction <add>, %205, %cst_60 [1] : vector<8x32xf32> to vector<8xf32>
    %207 = vector.shape_cast %206 : vector<8xf32> to vector<8x1xf32>
    %208 = math.exp %207 : vector<8x1xf32>
    %cst_61 = arith.constant dense<0.000000e+00> : vector<1xf32>
    %209 = vector.multi_reduction <add>, %208, %cst_61 [0] : vector<8x1xf32> to vector<1xf32>
    %210 = vector.shape_cast %209 : vector<1xf32> to vector<1x1xf32>
    %211 = tpu.reciprocal %210 {approx = true} : vector<1x1xf32> -> vector<1x1xf32>
    %212 = vector.broadcast %211 : vector<1x1xf32> to vector<8x1xf32>
    %213 = arith.mulf %208, %212 : vector<8x1xf32>
    %214 = vector.broadcast %213 : vector<8x1xf32> to vector<8x32xf32>
    %215 = arith.mulf %214, %68 : vector<8x32xf32>
    %cst_62 = arith.constant dense<0.000000e+00> : vector<32xf32>
    %216 = vector.multi_reduction <add>, %215, %cst_62 [0] : vector<8x32xf32> to vector<32xf32>
    %217 = vector.shape_cast %216 : vector<32xf32> to vector<1x32xf32>
    %218 = arith.mulf %213, %76 : vector<8x1xf32>
    %c0_63 = arith.constant 0 : index
    %c3_64 = arith.constant 3 : index
    %219 = vector.load %arg7[%c0_63, %c3_64] : memref<8x8xf32, #tpu.memory_space<vmem>>, vector<8x1xf32>
    tpu.vector_store %arg7[%c0_63, %c3_64], %218 {strides = array<i32>} : memref<8x8xf32, #tpu.memory_space<vmem>>, vector<8x1xf32>,
    %220 = arith.truncf %217 : vector<1x32xf32> to vector<1x32xbf16>
    %cst_65 = arith.constant dense<0.000000e+00> : vector<1x32xf32>
    %221 = tpu.matmul %220, %2, %cst_65 {dimension_numbers = #tpu.dot_dimension_numbers<[1], [0], [0], [1], [0, 0, 1, 1], [], []>} : vector<1x32xbf16>, vector<32x32xbf16>, vector<1x32xf32> -> vector<1x32xf32>
    %222 = arith.addf %221, %202 : vector<1x32xf32>
    %223 = math.tanh %222 : vector<1x32xf32>
    %224 = arith.truncf %223 : vector<1x32xf32> to vector<1x32xbf16>
    %cst_66 = arith.constant dense<0.000000e+00> : vector<1x66xf32>
    %225 = tpu.matmul %224, %3, %cst_66 {dimension_numbers = #tpu.dot_dimension_numbers<[1], [0], [0], [1], [0, 0, 1, 1], [], []>} : vector<1x32xbf16>, vector<32x66xbf16>, vector<1x66xf32> -> vector<1x66xf32>
    %226 = vector.extract_strided_slice %225 {offsets = [0, 64], sizes = [1, 2], strides = [1, 1]} : vector<1x66xf32> to vector<1x2xf32>
    %227 = arith.addf %226, %7 : vector<1x2xf32>
    %c3_67 = arith.constant 3 : index
    %c0_68 = arith.constant 0 : index
    %228 = vector.load %arg4[%c3_67, %c0_68] : memref<8x2xf32, #tpu.memory_space<vmem>>, vector<1x2xf32>
    tpu.vector_store %arg4[%c3_67, %c0_68], %227 {strides = array<i32>} : memref<8x2xf32, #tpu.memory_space<vmem>>, vector<1x2xf32>,
    %229 = vector.extract_strided_slice %225 {offsets = [0, 0], sizes = [1, 32], strides = [1, 1]} : vector<1x66xf32> to vector<1x32xf32>
    %230 = vector.extract_strided_slice %225 {offsets = [0, 32], sizes = [1, 32], strides = [1, 1]} : vector<1x66xf32> to vector<1x32xf32>
    %231 = arith.addf %230, %6 : vector<1x32xf32>
    %232 = vector.extract_strided_slice %227 {offsets = [0, 0], sizes = [1, 1], strides = [1, 1]} : vector<1x2xf32> to vector<1x1xf32>
    %233 = vector.broadcast %232 : vector<1x1xf32> to vector<1x32xf32>
    %234 = arith.mulf %233, %9 : vector<1x32xf32>
    %235 = arith.addf %231, %234 : vector<1x32xf32>
    %236 = vector.extract_strided_slice %227 {offsets = [0, 1], sizes = [1, 1], strides = [1, 1]} : vector<1x2xf32> to vector<1x1xf32>
    %237 = vector.broadcast %236 : vector<1x1xf32> to vector<1x32xf32>
    %238 = arith.mulf %237, %10 : vector<1x32xf32>
    %239 = arith.addf %235, %238 : vector<1x32xf32>
    %240 = vector.broadcast %229 : vector<1x32xf32> to vector<8x32xf32>
    %241 = arith.addf %240, %72 : vector<8x32xf32>
    %242 = math.tanh %241 : vector<8x32xf32>
    %cst_69 = arith.constant dense<0.000000e+00> : vector<8xf32>
    %243 = vector.multi_reduction <add>, %242, %cst_69 [1] : vector<8x32xf32> to vector<8xf32>
    %244 = vector.shape_cast %243 : vector<8xf32> to vector<8x1xf32>
    %245 = math.exp %244 : vector<8x1xf32>
    %cst_70 = arith.constant dense<0.000000e+00> : vector<1xf32>
    %246 = vector.multi_reduction <add>, %245, %cst_70 [0] : vector<8x1xf32> to vector<1xf32>
    %247 = vector.shape_cast %246 : vector<1xf32> to vector<1x1xf32>
    %248 = tpu.reciprocal %247 {approx = true} : vector<1x1xf32> -> vector<1x1xf32>
    %249 = vector.broadcast %248 : vector<1x1xf32> to vector<8x1xf32>
    %250 = arith.mulf %245, %249 : vector<8x1xf32>
    %251 = vector.broadcast %250 : vector<8x1xf32> to vector<8x32xf32>
    %252 = arith.mulf %251, %68 : vector<8x32xf32>
    %cst_71 = arith.constant dense<0.000000e+00> : vector<32xf32>
    %253 = vector.multi_reduction <add>, %252, %cst_71 [0] : vector<8x32xf32> to vector<32xf32>
    %254 = vector.shape_cast %253 : vector<32xf32> to vector<1x32xf32>
    %255 = arith.mulf %250, %76 : vector<8x1xf32>
    %c0_72 = arith.constant 0 : index
    %c4_73 = arith.constant 4 : index
    %256 = vector.load %arg7[%c0_72, %c4_73] : memref<8x8xf32, #tpu.memory_space<vmem>>, vector<8x1xf32>
    tpu.vector_store %arg7[%c0_72, %c4_73], %255 {strides = array<i32>} : memref<8x8xf32, #tpu.memory_space<vmem>>, vector<8x1xf32>,
    %257 = arith.truncf %254 : vector<1x32xf32> to vector<1x32xbf16>
    %cst_74 = arith.constant dense<0.000000e+00> : vector<1x32xf32>
    %258 = tpu.matmul %257, %2, %cst_74 {dimension_numbers = #tpu.dot_dimension_numbers<[1], [0], [0], [1], [0, 0, 1, 1], [], []>} : vector<1x32xbf16>, vector<32x32xbf16>, vector<1x32xf32> -> vector<1x32xf32>
    %259 = arith.addf %258, %239 : vector<1x32xf32>
    %260 = math.tanh %259 : vector<1x32xf32>
    %261 = arith.truncf %260 : vector<1x32xf32> to vector<1x32xbf16>
    %cst_75 = arith.constant dense<0.000000e+00> : vector<1x66xf32>
    %262 = tpu.matmul %261, %3, %cst_75 {dimension_numbers = #tpu.dot_dimension_numbers<[1], [0], [0], [1], [0, 0, 1, 1], [], []>} : vector<1x32xbf16>, vector<32x66xbf16>, vector<1x66xf32> -> vector<1x66xf32>
    %263 = vector.extract_strided_slice %262 {offsets = [0, 64], sizes = [1, 2], strides = [1, 1]} : vector<1x66xf32> to vector<1x2xf32>
    %264 = arith.addf %263, %7 : vector<1x2xf32>
    %c4_76 = arith.constant 4 : index
    %c0_77 = arith.constant 0 : index
    %265 = vector.load %arg4[%c4_76, %c0_77] : memref<8x2xf32, #tpu.memory_space<vmem>>, vector<1x2xf32>
    tpu.vector_store %arg4[%c4_76, %c0_77], %264 {strides = array<i32>} : memref<8x2xf32, #tpu.memory_space<vmem>>, vector<1x2xf32>,
    %266 = vector.extract_strided_slice %262 {offsets = [0, 0], sizes = [1, 32], strides = [1, 1]} : vector<1x66xf32> to vector<1x32xf32>
    %267 = vector.extract_strided_slice %262 {offsets = [0, 32], sizes = [1, 32], strides = [1, 1]} : vector<1x66xf32> to vector<1x32xf32>
    %268 = arith.addf %267, %6 : vector<1x32xf32>
    %269 = vector.extract_strided_slice %264 {offsets = [0, 0], sizes = [1, 1], strides = [1, 1]} : vector<1x2xf32> to vector<1x1xf32>
    %270 = vector.broadcast %269 : vector<1x1xf32> to vector<1x32xf32>
    %271 = arith.mulf %270, %9 : vector<1x32xf32>
    %272 = arith.addf %268, %271 : vector<1x32xf32>
    %273 = vector.extract_strided_slice %264 {offsets = [0, 1], sizes = [1, 1], strides = [1, 1]} : vector<1x2xf32> to vector<1x1xf32>
    %274 = vector.broadcast %273 : vector<1x1xf32> to vector<1x32xf32>
    %275 = arith.mulf %274, %10 : vector<1x32xf32>
    %276 = arith.addf %272, %275 : vector<1x32xf32>
    %277 = vector.broadcast %266 : vector<1x32xf32> to vector<8x32xf32>
    %278 = arith.addf %277, %72 : vector<8x32xf32>
    %279 = math.tanh %278 : vector<8x32xf32>
    %cst_78 = arith.constant dense<0.000000e+00> : vector<8xf32>
    %280 = vector.multi_reduction <add>, %279, %cst_78 [1] : vector<8x32xf32> to vector<8xf32>
    %281 = vector.shape_cast %280 : vector<8xf32> to vector<8x1xf32>
    %282 = math.exp %281 : vector<8x1xf32>
    %cst_79 = arith.constant dense<0.000000e+00> : vector<1xf32>
    %283 = vector.multi_reduction <add>, %282, %cst_79 [0] : vector<8x1xf32> to vector<1xf32>
    %284 = vector.shape_cast %283 : vector<1xf32> to vector<1x1xf32>
    %285 = tpu.reciprocal %284 {approx = true} : vector<1x1xf32> -> vector<1x1xf32>
    %286 = vector.broadcast %285 : vector<1x1xf32> to vector<8x1xf32>
    %287 = arith.mulf %282, %286 : vector<8x1xf32>
    %288 = vector.broadcast %287 : vector<8x1xf32> to vector<8x32xf32>
    %289 = arith.mulf %288, %68 : vector<8x32xf32>
    %cst_80 = arith.constant dense<0.000000e+00> : vector<32xf32>
    %290 = vector.multi_reduction <add>, %289, %cst_80 [0] : vector<8x32xf32> to vector<32xf32>
    %291 = vector.shape_cast %290 : vector<32xf32> to vector<1x32xf32>
    %292 = arith.mulf %287, %76 : vector<8x1xf32>
    %c0_81 = arith.constant 0 : index
    %c5_82 = arith.constant 5 : index
    %293 = vector.load %arg7[%c0_81, %c5_82] : memref<8x8xf32, #tpu.memory_space<vmem>>, vector<8x1xf32>
    tpu.vector_store %arg7[%c0_81, %c5_82], %292 {strides = array<i32>} : memref<8x8xf32, #tpu.memory_space<vmem>>, vector<8x1xf32>,
    %294 = arith.truncf %291 : vector<1x32xf32> to vector<1x32xbf16>
    %cst_83 = arith.constant dense<0.000000e+00> : vector<1x32xf32>
    %295 = tpu.matmul %294, %2, %cst_83 {dimension_numbers = #tpu.dot_dimension_numbers<[1], [0], [0], [1], [0, 0, 1, 1], [], []>} : vector<1x32xbf16>, vector<32x32xbf16>, vector<1x32xf32> -> vector<1x32xf32>
    %296 = arith.addf %295, %276 : vector<1x32xf32>
    %297 = math.tanh %296 : vector<1x32xf32>
    %298 = arith.truncf %297 : vector<1x32xf32> to vector<1x32xbf16>
    %cst_84 = arith.constant dense<0.000000e+00> : vector<1x66xf32>
    %299 = tpu.matmul %298, %3, %cst_84 {dimension_numbers = #tpu.dot_dimension_numbers<[1], [0], [0], [1], [0, 0, 1, 1], [], []>} : vector<1x32xbf16>, vector<32x66xbf16>, vector<1x66xf32> -> vector<1x66xf32>
    %300 = vector.extract_strided_slice %299 {offsets = [0, 64], sizes = [1, 2], strides = [1, 1]} : vector<1x66xf32> to vector<1x2xf32>
    %301 = arith.addf %300, %7 : vector<1x2xf32>
    %c5_85 = arith.constant 5 : index
    %c0_86 = arith.constant 0 : index
    %302 = vector.load %arg4[%c5_85, %c0_86] : memref<8x2xf32, #tpu.memory_space<vmem>>, vector<1x2xf32>
    tpu.vector_store %arg4[%c5_85, %c0_86], %301 {strides = array<i32>} : memref<8x2xf32, #tpu.memory_space<vmem>>, vector<1x2xf32>,
    %303 = vector.extract_strided_slice %299 {offsets = [0, 0], sizes = [1, 32], strides = [1, 1]} : vector<1x66xf32> to vector<1x32xf32>
    %304 = vector.extract_strided_slice %299 {offsets = [0, 32], sizes = [1, 32], strides = [1, 1]} : vector<1x66xf32> to vector<1x32xf32>
    %305 = arith.addf %304, %6 : vector<1x32xf32>
    %306 = vector.extract_strided_slice %301 {offsets = [0, 0], sizes = [1, 1], strides = [1, 1]} : vector<1x2xf32> to vector<1x1xf32>
    %307 = vector.broadcast %306 : vector<1x1xf32> to vector<1x32xf32>
    %308 = arith.mulf %307, %9 : vector<1x32xf32>
    %309 = arith.addf %305, %308 : vector<1x32xf32>
    %310 = vector.extract_strided_slice %301 {offsets = [0, 1], sizes = [1, 1], strides = [1, 1]} : vector<1x2xf32> to vector<1x1xf32>
    %311 = vector.broadcast %310 : vector<1x1xf32> to vector<1x32xf32>
    %312 = arith.mulf %311, %10 : vector<1x32xf32>
    %313 = arith.addf %309, %312 : vector<1x32xf32>
    %314 = vector.broadcast %303 : vector<1x32xf32> to vector<8x32xf32>
    %315 = arith.addf %314, %72 : vector<8x32xf32>
    %316 = math.tanh %315 : vector<8x32xf32>
    %cst_87 = arith.constant dense<0.000000e+00> : vector<8xf32>
    %317 = vector.multi_reduction <add>, %316, %cst_87 [1] : vector<8x32xf32> to vector<8xf32>
    %318 = vector.shape_cast %317 : vector<8xf32> to vector<8x1xf32>
    %319 = math.exp %318 : vector<8x1xf32>
    %cst_88 = arith.constant dense<0.000000e+00> : vector<1xf32>
    %320 = vector.multi_reduction <add>, %319, %cst_88 [0] : vector<8x1xf32> to vector<1xf32>
    %321 = vector.shape_cast %320 : vector<1xf32> to vector<1x1xf32>
    %322 = tpu.reciprocal %321 {approx = true} : vector<1x1xf32> -> vector<1x1xf32>
    %323 = vector.broadcast %322 : vector<1x1xf32> to vector<8x1xf32>
    %324 = arith.mulf %319, %323 : vector<8x1xf32>
    %325 = vector.broadcast %324 : vector<8x1xf32> to vector<8x32xf32>
    %326 = arith.mulf %325, %68 : vector<8x32xf32>
    %cst_89 = arith.constant dense<0.000000e+00> : vector<32xf32>
    %327 = vector.multi_reduction <add>, %326, %cst_89 [0] : vector<8x32xf32> to vector<32xf32>
    %328 = vector.shape_cast %327 : vector<32xf32> to vector<1x32xf32>
    %329 = arith.mulf %324, %76 : vector<8x1xf32>
    %c0_90 = arith.constant 0 : index
    %c6_91 = arith.constant 6 : index
    %330 = vector.load %arg7[%c0_90, %c6_91] : memref<8x8xf32, #tpu.memory_space<vmem>>, vector<8x1xf32>
    tpu.vector_store %arg7[%c0_90, %c6_91], %329 {strides = array<i32>} : memref<8x8xf32, #tpu.memory_space<vmem>>, vector<8x1xf32>,
    %331 = arith.truncf %328 : vector<1x32xf32> to vector<1x32xbf16>
    %cst_92 = arith.constant dense<0.000000e+00> : vector<1x32xf32>
    %332 = tpu.matmul %331, %2, %cst_92 {dimension_numbers = #tpu.dot_dimension_numbers<[1], [0], [0], [1], [0, 0, 1, 1], [], []>} : vector<1x32xbf16>, vector<32x32xbf16>, vector<1x32xf32> -> vector<1x32xf32>
    %333 = arith.addf %332, %313 : vector<1x32xf32>
    %334 = math.tanh %333 : vector<1x32xf32>
    %335 = arith.truncf %334 : vector<1x32xf32> to vector<1x32xbf16>
    %cst_93 = arith.constant dense<0.000000e+00> : vector<1x66xf32>
    %336 = tpu.matmul %335, %3, %cst_93 {dimension_numbers = #tpu.dot_dimension_numbers<[1], [0], [0], [1], [0, 0, 1, 1], [], []>} : vector<1x32xbf16>, vector<32x66xbf16>, vector<1x66xf32> -> vector<1x66xf32>
    %337 = vector.extract_strided_slice %336 {offsets = [0, 64], sizes = [1, 2], strides = [1, 1]} : vector<1x66xf32> to vector<1x2xf32>
    %338 = arith.addf %337, %7 : vector<1x2xf32>
    %c6_94 = arith.constant 6 : index
    %c0_95 = arith.constant 0 : index
    %339 = vector.load %arg4[%c6_94, %c0_95] : memref<8x2xf32, #tpu.memory_space<vmem>>, vector<1x2xf32>
    tpu.vector_store %arg4[%c6_94, %c0_95], %338 {strides = array<i32>} : memref<8x2xf32, #tpu.memory_space<vmem>>, vector<1x2xf32>,
    %340 = vector.extract_strided_slice %336 {offsets = [0, 0], sizes = [1, 32], strides = [1, 1]} : vector<1x66xf32> to vector<1x32xf32>
    %341 = vector.extract_strided_slice %336 {offsets = [0, 32], sizes = [1, 32], strides = [1, 1]} : vector<1x66xf32> to vector<1x32xf32>
    %342 = arith.addf %341, %6 : vector<1x32xf32>
    %343 = vector.extract_strided_slice %338 {offsets = [0, 0], sizes = [1, 1], strides = [1, 1]} : vector<1x2xf32> to vector<1x1xf32>
    %344 = vector.broadcast %343 : vector<1x1xf32> to vector<1x32xf32>
    %345 = arith.mulf %344, %9 : vector<1x32xf32>
    %346 = arith.addf %342, %345 : vector<1x32xf32>
    %347 = vector.extract_strided_slice %338 {offsets = [0, 1], sizes = [1, 1], strides = [1, 1]} : vector<1x2xf32> to vector<1x1xf32>
    %348 = vector.broadcast %347 : vector<1x1xf32> to vector<1x32xf32>
    %349 = arith.mulf %348, %10 : vector<1x32xf32>
    %350 = arith.addf %346, %349 : vector<1x32xf32>
    %351 = vector.broadcast %340 : vector<1x32xf32> to vector<8x32xf32>
    %352 = arith.addf %351, %72 : vector<8x32xf32>
    %353 = math.tanh %352 : vector<8x32xf32>
    %cst_96 = arith.constant dense<0.000000e+00> : vector<8xf32>
    %354 = vector.multi_reduction <add>, %353, %cst_96 [1] : vector<8x32xf32> to vector<8xf32>
    %355 = vector.shape_cast %354 : vector<8xf32> to vector<8x1xf32>
    %356 = math.exp %355 : vector<8x1xf32>
    %cst_97 = arith.constant dense<0.000000e+00> : vector<1xf32>
    %357 = vector.multi_reduction <add>, %356, %cst_97 [0] : vector<8x1xf32> to vector<1xf32>
    %358 = vector.shape_cast %357 : vector<1xf32> to vector<1x1xf32>
    %359 = tpu.reciprocal %358 {approx = true} : vector<1x1xf32> -> vector<1x1xf32>
    %360 = vector.broadcast %359 : vector<1x1xf32> to vector<8x1xf32>
    %361 = arith.mulf %356, %360 : vector<8x1xf32>
    %362 = vector.broadcast %361 : vector<8x1xf32> to vector<8x32xf32>
    %363 = arith.mulf %362, %68 : vector<8x32xf32>
    %cst_98 = arith.constant dense<0.000000e+00> : vector<32xf32>
    %364 = vector.multi_reduction <add>, %363, %cst_98 [0] : vector<8x32xf32> to vector<32xf32>
    %365 = vector.shape_cast %364 : vector<32xf32> to vector<1x32xf32>
    %366 = arith.mulf %361, %76 : vector<8x1xf32>
    %c0_99 = arith.constant 0 : index
    %c7_100 = arith.constant 7 : index
    %367 = vector.load %arg7[%c0_99, %c7_100] : memref<8x8xf32, #tpu.memory_space<vmem>>, vector<8x1xf32>
    tpu.vector_store %arg7[%c0_99, %c7_100], %366 {strides = array<i32>} : memref<8x8xf32, #tpu.memory_space<vmem>>, vector<8x1xf32>,
    %368 = arith.truncf %365 : vector<1x32xf32> to vector<1x32xbf16>
    %cst_101 = arith.constant dense<0.000000e+00> : vector<1x32xf32>
    %369 = tpu.matmul %368, %2, %cst_101 {dimension_numbers = #tpu.dot_dimension_numbers<[1], [0], [0], [1], [0, 0, 1, 1], [], []>} : vector<1x32xbf16>, vector<32x32xbf16>, vector<1x32xf32> -> vector<1x32xf32>
    %370 = arith.addf %369, %350 : vector<1x32xf32>
    %371 = math.tanh %370 : vector<1x32xf32>
    %372 = arith.truncf %371 : vector<1x32xf32> to vector<1x32xbf16>
    %cst_102 = arith.constant dense<0.000000e+00> : vector<1x66xf32>
    %373 = tpu.matmul %372, %3, %cst_102 {dimension_numbers = #tpu.dot_dimension_numbers<[1], [0], [0], [1], [0, 0, 1, 1], [], []>} : vector<1x32xbf16>, vector<32x66xbf16>, vector<1x66xf32> -> vector<1x66xf32>
    %374 = vector.extract_strided_slice %373 {offsets = [0, 64], sizes = [1, 2], strides = [1, 1]} : vector<1x66xf32> to vector<1x2xf32>
    %375 = arith.addf %374, %7 : vector<1x2xf32>
    %c7_103 = arith.constant 7 : index
    %c0_104 = arith.constant 0 : index
    %376 = vector.load %arg4[%c7_103, %c0_104] : memref<8x2xf32, #tpu.memory_space<vmem>>, vector<1x2xf32>
    tpu.vector_store %arg4[%c7_103, %c0_104], %375 {strides = array<i32>} : memref<8x2xf32, #tpu.memory_space<vmem>>, vector<1x2xf32>,
    %c0_105 = arith.constant 0 : index
    %c0_106 = arith.constant 0 : index
    %377 = vector.load %arg7[%c0_105, %c0_106] : memref<8x8xf32, #tpu.memory_space<vmem>>, vector<8x8xf32>
    %378 = vector.extract_strided_slice %377 {offsets = [0, 0], sizes = [8, 1], strides = [1, 1]} : vector<8x8xf32> to vector<8x1xf32>
    %cst_107 = arith.constant 0.000000e+00 : f32
    %379 = vector.shape_cast %378 : vector<8x1xf32> to vector<8x1xf32>
    %380 = vector.broadcast %379 : vector<8x1xf32> to vector<8x8xf32>
    %381 = vector.broadcast %cst_107 : f32 to vector<8x8xf32>
    %382 = arith.select %79, %380, %381 : vector<8x8xi1>, vector<8x8xf32>
    %cst_108 = arith.constant dense<0.000000e+00> : vector<8xf32>
    %383 = vector.multi_reduction <add>, %382, %cst_108 [0] : vector<8x8xf32> to vector<8xf32>
    %384 = vector.shape_cast %383 : vector<8xf32> to vector<1x8xf32>
    %c0_109 = arith.constant 0 : index
    %c0_110 = arith.constant 0 : index
    %385 = vector.load %arg5[%c0_109, %c0_110] : memref<8x8xf32, #tpu.memory_space<vmem>>, vector<1x8xf32>
    tpu.vector_store %arg5[%c0_109, %c0_110], %384 {strides = array<i32>} : memref<8x8xf32, #tpu.memory_space<vmem>>, vector<1x8xf32>,
    %386 = vector.extract_strided_slice %377 {offsets = [0, 1], sizes = [8, 1], strides = [1, 1]} : vector<8x8xf32> to vector<8x1xf32>
    %cst_111 = arith.constant 0.000000e+00 : f32
    %387 = vector.shape_cast %386 : vector<8x1xf32> to vector<8x1xf32>
    %388 = vector.broadcast %387 : vector<8x1xf32> to vector<8x8xf32>
    %389 = vector.broadcast %cst_111 : f32 to vector<8x8xf32>
    %390 = arith.select %79, %388, %389 : vector<8x8xi1>, vector<8x8xf32>
    %cst_112 = arith.constant dense<0.000000e+00> : vector<8xf32>
    %391 = vector.multi_reduction <add>, %390, %cst_112 [0] : vector<8x8xf32> to vector<8xf32>
    %392 = vector.shape_cast %391 : vector<8xf32> to vector<1x8xf32>
    %c1_113 = arith.constant 1 : index
    %c0_114 = arith.constant 0 : index
    %393 = vector.load %arg5[%c1_113, %c0_114] : memref<8x8xf32, #tpu.memory_space<vmem>>, vector<1x8xf32>
    tpu.vector_store %arg5[%c1_113, %c0_114], %392 {strides = array<i32>} : memref<8x8xf32, #tpu.memory_space<vmem>>, vector<1x8xf32>,
    %394 = vector.extract_strided_slice %377 {offsets = [0, 2], sizes = [8, 1], strides = [1, 1]} : vector<8x8xf32> to vector<8x1xf32>
    %cst_115 = arith.constant 0.000000e+00 : f32
    %395 = vector.shape_cast %394 : vector<8x1xf32> to vector<8x1xf32>
    %396 = vector.broadcast %395 : vector<8x1xf32> to vector<8x8xf32>
    %397 = vector.broadcast %cst_115 : f32 to vector<8x8xf32>
    %398 = arith.select %79, %396, %397 : vector<8x8xi1>, vector<8x8xf32>
    %cst_116 = arith.constant dense<0.000000e+00> : vector<8xf32>
    %399 = vector.multi_reduction <add>, %398, %cst_116 [0] : vector<8x8xf32> to vector<8xf32>
    %400 = vector.shape_cast %399 : vector<8xf32> to vector<1x8xf32>
    %c2_117 = arith.constant 2 : index
    %c0_118 = arith.constant 0 : index
    %401 = vector.load %arg5[%c2_117, %c0_118] : memref<8x8xf32, #tpu.memory_space<vmem>>, vector<1x8xf32>
    tpu.vector_store %arg5[%c2_117, %c0_118], %400 {strides = array<i32>} : memref<8x8xf32, #tpu.memory_space<vmem>>, vector<1x8xf32>,
    %402 = vector.extract_strided_slice %377 {offsets = [0, 3], sizes = [8, 1], strides = [1, 1]} : vector<8x8xf32> to vector<8x1xf32>
    %cst_119 = arith.constant 0.000000e+00 : f32
    %403 = vector.shape_cast %402 : vector<8x1xf32> to vector<8x1xf32>
    %404 = vector.broadcast %403 : vector<8x1xf32> to vector<8x8xf32>
    %405 = vector.broadcast %cst_119 : f32 to vector<8x8xf32>
    %406 = arith.select %79, %404, %405 : vector<8x8xi1>, vector<8x8xf32>
    %cst_120 = arith.constant dense<0.000000e+00> : vector<8xf32>
    %407 = vector.multi_reduction <add>, %406, %cst_120 [0] : vector<8x8xf32> to vector<8xf32>
    %408 = vector.shape_cast %407 : vector<8xf32> to vector<1x8xf32>
    %c3_121 = arith.constant 3 : index
    %c0_122 = arith.constant 0 : index
    %409 = vector.load %arg5[%c3_121, %c0_122] : memref<8x8xf32, #tpu.memory_space<vmem>>, vector<1x8xf32>
    tpu.vector_store %arg5[%c3_121, %c0_122], %408 {strides = array<i32>} : memref<8x8xf32, #tpu.memory_space<vmem>>, vector<1x8xf32>,
    %410 = vector.extract_strided_slice %377 {offsets = [0, 4], sizes = [8, 1], strides = [1, 1]} : vector<8x8xf32> to vector<8x1xf32>
    %cst_123 = arith.constant 0.000000e+00 : f32
    %411 = vector.shape_cast %410 : vector<8x1xf32> to vector<8x1xf32>
    %412 = vector.broadcast %411 : vector<8x1xf32> to vector<8x8xf32>
    %413 = vector.broadcast %cst_123 : f32 to vector<8x8xf32>
    %414 = arith.select %79, %412, %413 : vector<8x8xi1>, vector<8x8xf32>
    %cst_124 = arith.constant dense<0.000000e+00> : vector<8xf32>
    %415 = vector.multi_reduction <add>, %414, %cst_124 [0] : vector<8x8xf32> to vector<8xf32>
    %416 = vector.shape_cast %415 : vector<8xf32> to vector<1x8xf32>
    %c4_125 = arith.constant 4 : index
    %c0_126 = arith.constant 0 : index
    %417 = vector.load %arg5[%c4_125, %c0_126] : memref<8x8xf32, #tpu.memory_space<vmem>>, vector<1x8xf32>
    tpu.vector_store %arg5[%c4_125, %c0_126], %416 {strides = array<i32>} : memref<8x8xf32, #tpu.memory_space<vmem>>, vector<1x8xf32>,
    %418 = vector.extract_strided_slice %377 {offsets = [0, 5], sizes = [8, 1], strides = [1, 1]} : vector<8x8xf32> to vector<8x1xf32>
    %cst_127 = arith.constant 0.000000e+00 : f32
    %419 = vector.shape_cast %418 : vector<8x1xf32> to vector<8x1xf32>
    %420 = vector.broadcast %419 : vector<8x1xf32> to vector<8x8xf32>
    %421 = vector.broadcast %cst_127 : f32 to vector<8x8xf32>
    %422 = arith.select %79, %420, %421 : vector<8x8xi1>, vector<8x8xf32>
    %cst_128 = arith.constant dense<0.000000e+00> : vector<8xf32>
    %423 = vector.multi_reduction <add>, %422, %cst_128 [0] : vector<8x8xf32> to vector<8xf32>
    %424 = vector.shape_cast %423 : vector<8xf32> to vector<1x8xf32>
    %c5_129 = arith.constant 5 : index
    %c0_130 = arith.constant 0 : index
    %425 = vector.load %arg5[%c5_129, %c0_130] : memref<8x8xf32, #tpu.memory_space<vmem>>, vector<1x8xf32>
    tpu.vector_store %arg5[%c5_129, %c0_130], %424 {strides = array<i32>} : memref<8x8xf32, #tpu.memory_space<vmem>>, vector<1x8xf32>,
    %426 = vector.extract_strided_slice %377 {offsets = [0, 6], sizes = [8, 1], strides = [1, 1]} : vector<8x8xf32> to vector<8x1xf32>
    %cst_131 = arith.constant 0.000000e+00 : f32
    %427 = vector.shape_cast %426 : vector<8x1xf32> to vector<8x1xf32>
    %428 = vector.broadcast %427 : vector<8x1xf32> to vector<8x8xf32>
    %429 = vector.broadcast %cst_131 : f32 to vector<8x8xf32>
    %430 = arith.select %79, %428, %429 : vector<8x8xi1>, vector<8x8xf32>
    %cst_132 = arith.constant dense<0.000000e+00> : vector<8xf32>
    %431 = vector.multi_reduction <add>, %430, %cst_132 [0] : vector<8x8xf32> to vector<8xf32>
    %432 = vector.shape_cast %431 : vector<8xf32> to vector<1x8xf32>
    %c6_133 = arith.constant 6 : index
    %c0_134 = arith.constant 0 : index
    %433 = vector.load %arg5[%c6_133, %c0_134] : memref<8x8xf32, #tpu.memory_space<vmem>>, vector<1x8xf32>
    tpu.vector_store %arg5[%c6_133, %c0_134], %432 {strides = array<i32>} : memref<8x8xf32, #tpu.memory_space<vmem>>, vector<1x8xf32>,
    %434 = vector.extract_strided_slice %377 {offsets = [0, 7], sizes = [8, 1], strides = [1, 1]} : vector<8x8xf32> to vector<8x1xf32>
    %cst_135 = arith.constant 0.000000e+00 : f32
    %435 = vector.shape_cast %434 : vector<8x1xf32> to vector<8x1xf32>
    %436 = vector.broadcast %435 : vector<8x1xf32> to vector<8x8xf32>
    %437 = vector.broadcast %cst_135 : f32 to vector<8x8xf32>
    %438 = arith.select %79, %436, %437 : vector<8x8xi1>, vector<8x8xf32>
    %cst_136 = arith.constant dense<0.000000e+00> : vector<8xf32>
    %439 = vector.multi_reduction <add>, %438, %cst_136 [0] : vector<8x8xf32> to vector<8xf32>
    %440 = vector.shape_cast %439 : vector<8xf32> to vector<1x8xf32>
    %c7_137 = arith.constant 7 : index
    %c0_138 = arith.constant 0 : index
    %441 = vector.load %arg5[%c7_137, %c0_138] : memref<8x8xf32, #tpu.memory_space<vmem>>, vector<1x8xf32>
    tpu.vector_store %arg5[%c7_137, %c0_138], %440 {strides = array<i32>} : memref<8x8xf32, #tpu.memory_space<vmem>>, vector<1x8xf32>,
    return
  }
}

</mosaic_0001>

<llo_original>
// kernel: seq2seq_forward.1
$region0: #{seq2seq_forward.1}
  #allocation0 [shape = 'u32[]', space=smem, size = 0x4, offset = 0x4, fixed_abs, tag = 'smem constant byte address 0x4 - core index']
  #allocation1 [shape = 'u32[144,128]{1,0:T(1,128)}', space=vmem, size = 0x12000, scoped, tag = 'internal scratch']
  #allocation2 [shape = 'f32[8,32]{1,0:T(8,128)}', space=vmem, size = 0x1000, scoped, tag = 'scratch operand']
  #allocation3 [shape = 'f32[8,8]{1,0:T(8,128)}', space=vmem, size = 0x1000, scoped, tag = 'scratch operand']
  %s0 = inlined_call_operand.vmem [shape: s32[8,1], index: 0, kind: input, shape index: {}]
  %s1 = inlined_call_operand.hbm [shape: f32[16,32], index: 1, kind: input, shape index: {}]
  %s2 = inlined_call_operand.hbm [shape: bf16[32,162], index: 2, kind: input, shape index: {}]
  %s3 = inlined_call_operand.vmem [shape: f32[1,132], index: 3, kind: input, shape index: {}]
  %s4 = inlined_call_operand.vmem [shape: f32[8,2], index: 4, kind: output, shape index: {0}]
  %s5 = inlined_call_operand.hbm [shape: f32[8,8], index: 5, kind: output, shape index: {1}]
  %6 = xla_tuple %s4, %s5
  %s7 = sld [smem:[#allocation0]]
  $region42: #{seq2seq_forward.1} parent=0
    _
  %s9 = ssub.s32 1, %s7
  %s10 = scalar_select 0, %s9, %s7
  $region1: #{seq2seq_forward.1} parent=0
    #allocation4 [shape = 'u8[8192]{0}', space=vmem, size = 0x2000, scoped, tag = 'input window, operand 1, single buffered']
    #allocation5 [shape = 's32[1]{0}', space=sflag, size = 0x4, scoped, tag = 'scoped memory for seq2seq_forward.1']
    #allocation6 [shape = 's32[1]{0}', space=sflag, size = 0x4, scoped, tag = 'scoped memory for seq2seq_forward.1']
    #allocation7 [shape = 'u8[16384]{0}', space=vmem, size = 0x4000, scoped, tag = 'input window, operand 2, single buffered']
    #allocation8 [shape = 's32[1]{0}', space=sflag, size = 0x4, scoped, tag = 'scoped memory for seq2seq_forward.1']
    #allocation9 [shape = 'u8[4096]{0}', space=vmem, size = 0x1000, scoped, tag = 'output window, operand 1, single buffered']
    %11 = vsyncpa [#allocation5], 0
    %12 = vsyncpa [#allocation8], 0
    %13 = vsyncpa [#allocation6], 0
    // Predicated region
    $region2: #{seq2seq_forward.1} parent=1 // pred_check
      _
    $region3: #{seq2seq_forward.1} parent=1 // pred_check_branch
      %15 = sbr.rel (0) target = $region5
    $region4: #{seq2seq_forward.1} parent=1 // pred_region
      _
    $region5: #{seq2seq_forward.1} parent=1 // pred_fallthru
      _
    // Predicated region
    $region6: #{seq2seq_forward.1} parent=1 // pred_check
      _
    $region7: #{seq2seq_forward.1} parent=1 // pred_check_branch
      %17 = sbr.rel (0) target = $region9
    $region8: #{seq2seq_forward.1} parent=1 // pred_region
      %s19 = ssub.s32 256, 256
      %20 = vsyncadd [#allocation5], %s19
      %s21 = sshll.u32 [#allocation4], 4
      %s22 = int_to_ptr.vmem [resolvable:$true] %s21
      %27 = dma.hbm_to_vmem [thread:$0]  %s1, 256, %s22, [#allocation5], 128, 128, 8
    $region9: #{seq2seq_forward.1} parent=1 // pred_fallthru
      _
    // Predicated region
    $region10: #{seq2seq_forward.1} parent=1 // pred_check
      _
    $region11: #{seq2seq_forward.1} parent=1 // pred_check_branch
      %29 = sbr.rel (0) target = $region13
    $region12: #{seq2seq_forward.1} parent=1 // pred_region
      %s31 = ssub.s32 512, 512
      %32 = vsyncadd [#allocation8], %s31
      %s33 = sshll.u32 [#allocation7], 4
      %s34 = int_to_ptr.vmem [resolvable:$true] %s33
      %39 = dma.hbm_to_vmem [thread:$0]  %s2, 512, %s34, [#allocation8], 128, 128, 8
    $region13: #{seq2seq_forward.1} parent=1 // pred_fallthru
      _
    // Predicated region
    $region14: #{seq2seq_forward.1} parent=1 // pred_check
      _
    $region15: #{seq2seq_forward.1} parent=1 // pred_check_branch
      %41 = sbr.rel (0) target = $region17
    $region16: #{seq2seq_forward.1} parent=1 // pred_region
      _
    $region17: #{seq2seq_forward.1} parent=1 // pred_fallthru
      _
    // Predicated region
    $region18: #{seq2seq_forward.1} parent=1 // pred_check
      _
    $region19: #{seq2seq_forward.1} parent=1 // pred_check_branch
      %43 = sbr.rel (0) target = $region21
    $region20: #{seq2seq_forward.1} parent=1 // pred_region
      %44 = dma.done [#allocation5], 256
    $region21: #{seq2seq_forward.1} parent=1 // pred_fallthru
      _
    // Predicated region
    $region22: #{seq2seq_forward.1} parent=1 // pred_check
      _
    $region23: #{seq2seq_forward.1} parent=1 // pred_check_branch
      %46 = sbr.rel (0) target = $region25
    $region24: #{seq2seq_forward.1} parent=1 // pred_region
      %47 = dma.done [#allocation8], 512
    $region25: #{seq2seq_forward.1} parent=1 // pred_fallthru
      _
    %v49 = vld [vmem:[#allocation7] sm:$0xf]
    %v50 = vld [vmem:[#allocation7 + $0x8] sm:$0xf]
    %v51 = vld [vmem:[#allocation7 + $0x10] sm:$0xf]
    %v52 = vld [vmem:[#allocation7 + $0x18] sm:$0xf]
    %v53 = vld [vmem:[#allocation7] sm:$0xff]
    %v54 = vld [vmem:[#allocation7 + $0x8] sm:$0xff]
    %v55 = vld [vmem:[#allocation7 + $0x10] sm:$0xff]
    %v56 = vld [vmem:[#allocation7 + $0x18] sm:$0xff]
    %v57 = vld [vmem:[%s3] sm:$0x3]
    %v58 = vlaneseq
    %v59 = vand.u32 %v58, 127
    %v60 = vld [vmem:[%s0] sm:$0xff]
    %61 = vset.pattern.permute.xlu0 0
    %62 = vperm.xlu0 %61, %v60
    %v63 = vpop.permute.xlu0 %62
    %vm64 = vcmp.eq.s32.totalorder %v59, %v63
    %v65 = vsel %vm64, 1, 0
    %v66 = vcvt.s32.f32 %v65
    %v67 = vld [vmem:[#allocation4] sm:$0xff]
    %v68 = vld [vmem:[#allocation4 + $0x8] sm:$0xff]
    %vm69 = vcmask 130048
    %v71 = vsel %vm69, %v66, 0
    %73 = vmatprep.subr.mxu0 0.0
    %74 = vmatpush1.msra.mxu0 %v67
    %75 = vmatprep.subr.mxu0 0.0
    %76 = vmatpush1.msra.mxu0 %v68
    %77 = vmatprep.subr.mxu0 0.0
    %78 = vmatpush1.msra.mxu0 0.0
    %79 = vmatprep.subr.mxu0 0.0
    %80 = vmatpush1.msra.mxu0 0.0
    %81 = vmatprep.subr.mxu0 0.0
    %82 = vmatpush1.msra.mxu0 0.0
    %83 = vmatprep.subr.mxu0 0.0
    %84 = vmatpush1.msra.mxu0 0.0
    %85 = vmatprep.subr.mxu0 0.0
    %86 = vmatpush1.msra.mxu0 0.0
    %87 = vmatprep.subr.mxu0 0.0
    %88 = vmatpush1.msra.mxu0 0.0
    %89 = vmatprep.subr.mxu0 0.0
    %90 = vmatpush1.msra.mxu0 0.0
    %91 = vmatprep.subr.mxu0 0.0
    %92 = vmatpush1.msra.mxu0 0.0
    %93 = vmatprep.subr.mxu0 0.0
    %94 = vmatpush1.msra.mxu0 0.0
    %95 = vmatprep.subr.mxu0 0.0
    %96 = vmatpush1.msra.mxu0 0.0
    %97 = vmatprep.subr.mxu0 0.0
    %98 = vmatpush1.msra.mxu0 0.0
    %99 = vmatprep.subr.mxu0 0.0
    %100 = vmatpush1.msra.mxu0 0.0
    %101 = vmatprep.subr.mxu0 0.0
    %102 = vmatpush1.msra.mxu0 0.0
    %103 = vmatprep.subr.mxu0 0.0
    %104 = vmatpush1.msra.mxu0 0.0
    %105 = vmatprep.subr.mxu0 0.0
    %106 = vmatpush1.msra.mxu0 0.0
    %107 = vmatprep.subr.mxu0 0.0
    %108 = vmatpush1.msra.mxu0 0.0
    %109 = vmatprep.subr.mxu0 0.0
    %110 = vmatpush1.msra.mxu0 0.0
    %111 = vmatprep.subr.mxu0 0.0
    %112 = vmatpush1.msra.mxu0 0.0
    %113 = vmatprep.subr.mxu0 0.0
    %114 = vmatpush1.msra.mxu0 0.0
    %115 = vmatprep.subr.mxu0 0.0
    %116 = vmatpush1.msra.mxu0 0.0
    %117 = vmatprep.subr.mxu0 0.0
    %118 = vmatpush1.msra.mxu0 0.0
    %119 = vmatprep.subr.mxu0 0.0
    %120 = vmatpush1.msra.mxu0 0.0
    %121 = vmatprep.subr.mxu0 0.0
    %122 = vmatpush1.msra.mxu0 0.0
    %123 = vmatprep.subr.mxu0 0.0
    %124 = vmatpush1.msra.mxu0 0.0
    %125 = vmatprep.subr.mxu0 0.0
    %126 = vmatpush1.msra.mxu0 0.0
    %127 = vmatprep.subr.mxu0 0.0
    %128 = vmatpush1.msra.mxu0 0.0
    %129 = vmatprep.subr.mxu0 0.0
    %130 = vmatpush1.msra.mxu0 0.0
    %131 = vmatprep.subr.mxu0 0.0
    %132 = vmatpush1.msra.mxu0 0.0
    %133 = vmatprep.subr.mxu0 0.0
    %134 = vmatpush1.msra.mxu0 0.0
    %135 = vmatprep.subr.mxu0 0.0
    %136 = vmatpush1.msra.mxu0 0.0
    %137 = vmatprep.mubr.f32.mxu0 0.0
    %138 = vmatmul.mubr.f32.gmra.mrb[0].mxu0 %v71
    %v139 = vpop.f32.mrb[0].mxu0
    %v140 = vadd.f32 0.0, %v139
    %v141 = vpop.f32.mrb[0].mxu0
    %142 = vdwg.mxu0
    %v147 = vunpack.c.l.b16 %v49
    %v148 = vunpack.c.l.b16 %v50
    %v149 = vunpack.c.l.b16 %v51
    %v150 = vunpack.c.l.b16 %v52
    %v151 = vpack.c.b16 %v148, %v147
    %v152 = vpack.c.b16 %v150, %v149
    %vm155 = vcmask 261120
    %v157 = vsel %vm155, 0, 0
    %159 = vmatprep.subr.bf16.mxu0 0
    %160 = vmatpush1.bf16.msra.mxu0 %v151
    %161 = vmatprep.subr.bf16.mxu0 0
    %162 = vmatpush1.bf16.msra.mxu0 %v152
    %163 = vmatprep.subr.bf16.mxu0 0
    %164 = vmatpush1.bf16.msra.mxu0 0
    %165 = vmatprep.subr.bf16.mxu0 0
    %166 = vmatpush1.bf16.msra.mxu0 0
    %167 = vmatprep.subr.bf16.mxu0 0
    %168 = vmatpush1.bf16.msra.mxu0 0
    %169 = vmatprep.subr.bf16.mxu0 0
    %170 = vmatpush1.bf16.msra.mxu0 0
    %171 = vmatprep.subr.bf16.mxu0 0
    %172 = vmatpush1.bf16.msra.mxu0 0
    %173 = vmatprep.subr.bf16.mxu0 0
    %174 = vmatpush1.bf16.msra.mxu0 0
    %175 = vmatprep.subr.bf16.mxu0 0
    %176 = vmatpush1.bf16.msra.mxu0 0
    %177 = vmatprep.subr.bf16.mxu0 0
    %178 = vmatpush1.bf16.msra.mxu0 0
    %179 = vmatprep.subr.bf16.mxu0 0
    %180 = vmatpush1.bf16.msra.mxu0 0
    %181 = vmatprep.subr.bf16.mxu0 0
    %182 = vmatpush1.bf16.msra.mxu0 0
    %183 = vmatprep.subr.bf16.mxu0 0
    %184 = vmatpush1.bf16.msra.mxu0 0
    %185 = vmatprep.subr.bf16.mxu0 0
    %186 = vmatpush1.bf16.msra.mxu0 0
    %187 = vmatprep.subr.bf16.mxu0 0
    %188 = vmatpush1.bf16.msra.mxu0 0
    %189 = vmatprep.subr.bf16.mxu0 0
    %190 = vmatpush1.bf16.msra.mxu0 0
    %191 = vmatprep.mubr.bf16.mxu0 0
    %192 = vmatmul.mubr.bf16.gmra.mrb[0].mxu0 %v157
    %v193 = vpop.f32.mrb[0].mxu0
    %v194 = vadd.f32 0.0, %v193
    %v195 = vpop.f32.mrb[0].mxu0
    %v196 = vpop.f32.mrb[0].mxu0
    %v197 = vpop.f32.mrb[0].mxu0
    %198 = vdwg.mxu0
    %v199 = vadd.f32 %v140, %v194
    %v200 = vtanh.pop %v199
    %vm201 = vcmask 253952
    %202 = vst.msk [vmem:[#allocation2] sm:$0x1] %vm201, %v200
    %v203 = vpack.c.bf16 %v200, %v200
    %v205 = vsel %vm155, %v203, 0
    %207 = vmatprep.subr.bf16.mxu0 0
    %208 = vmatpush1.bf16.msra.mxu0 %v151
    %209 = vmatprep.subr.bf16.mxu0 0
    %210 = vmatpush1.bf16.msra.mxu0 %v152
    %211 = vmatprep.subr.bf16.mxu0 0
    %212 = vmatpush1.bf16.msra.mxu0 0
    %213 = vmatprep.subr.bf16.mxu0 0
    %214 = vmatpush1.bf16.msra.mxu0 0
    %215 = vmatprep.subr.bf16.mxu0 0
    %216 = vmatpush1.bf16.msra.mxu0 0
    %217 = vmatprep.subr.bf16.mxu0 0
    %218 = vmatpush1.bf16.msra.mxu0 0
    %219 = vmatprep.subr.bf16.mxu0 0
    %220 = vmatpush1.bf16.msra.mxu0 0
    %221 = vmatprep.subr.bf16.mxu0 0
    %222 = vmatpush1.bf16.msra.mxu0 0
    %223 = vmatprep.subr.bf16.mxu0 0
    %224 = vmatpush1.bf16.msra.mxu0 0
    %225 = vmatprep.subr.bf16.mxu0 0
    %226 = vmatpush1.bf16.msra.mxu0 0
    %227 = vmatprep.subr.bf16.mxu0 0
    %228 = vmatpush1.bf16.msra.mxu0 0
    %229 = vmatprep.subr.bf16.mxu0 0
    %230 = vmatpush1.bf16.msra.mxu0 0
    %231 = vmatprep.subr.bf16.mxu0 0
    %232 = vmatpush1.bf16.msra.mxu0 0
    %233 = vmatprep.subr.bf16.mxu0 0
    %234 = vmatpush1.bf16.msra.mxu0 0
    %235 = vmatprep.subr.bf16.mxu0 0
    %236 = vmatpush1.bf16.msra.mxu0 0
    %237 = vmatprep.subr.bf16.mxu0 0
    %238 = vmatpush1.bf16.msra.mxu0 0
    %239 = vmatprep.mubr.bf16.mxu0 0
    %240 = vmatmul.mubr.bf16.gmra.mrb[0].mxu0 %v205
    %v241 = vpop.f32.mrb[0].mxu0
    %v242 = vadd.f32 0.0, %v241
    %v243 = vpop.f32.mrb[0].mxu0
    %v244 = vpop.f32.mrb[0].mxu0
    %v245 = vpop.f32.mrb[0].mxu0
    %246 = vdwg.mxu0
    %v248 = vrot.slane %v242, 7
    %v250 = vadd.f32 %v140, %v248
    %v251 = vtanh.pop %v250
    %vm252 = vcmask 254977
    %253 = vst.msk [vmem:[#allocation2] sm:$0x2] %vm252, %v251
    %v254 = vpack.c.bf16 %v251, %v251
    %v256 = vshrl.u32 %v254, 16
    %v259 = vsel %vm155, %v256, 0
    %261 = vmatprep.subr.bf16.mxu0 0
    %262 = vmatpush1.bf16.msra.mxu0 %v151
    %263 = vmatprep.subr.bf16.mxu0 0
    %264 = vmatpush1.bf16.msra.mxu0 %v152
    %265 = vmatprep.subr.bf16.mxu0 0
    %266 = vmatpush1.bf16.msra.mxu0 0
    %267 = vmatprep.subr.bf16.mxu0 0
    %268 = vmatpush1.bf16.msra.mxu0 0
    %269 = vmatprep.subr.bf16.mxu0 0
    %270 = vmatpush1.bf16.msra.mxu0 0
    %271 = vmatprep.subr.bf16.mxu0 0
    %272 = vmatpush1.bf16.msra.mxu0 0
    %273 = vmatprep.subr.bf16.mxu0 0
    %274 = vmatpush1.bf16.msra.mxu0 0
    %275 = vmatprep.subr.bf16.mxu0 0
    %276 = vmatpush1.bf16.msra.mxu0 0
    %277 = vmatprep.subr.bf16.mxu0 0
    %278 = vmatpush1.bf16.msra.mxu0 0
    %279 = vmatprep.subr.bf16.mxu0 0
    %280 = vmatpush1.bf16.msra.mxu0 0
    %281 = vmatprep.subr.bf16.mxu0 0
    %282 = vmatpush1.bf16.msra.mxu0 0
    %283 = vmatprep.subr.bf16.mxu0 0
    %284 = vmatpush1.bf16.msra.mxu0 0
    %285 = vmatprep.subr.bf16.mxu0 0
    %286 = vmatpush1.bf16.msra.mxu0 0
    %287 = vmatprep.subr.bf16.mxu0 0
    %288 = vmatpush1.bf16.msra.mxu0 0
    %289 = vmatprep.subr.bf16.mxu0 0
    %290 = vmatpush1.bf16.msra.mxu0 0
    %291 = vmatprep.subr.bf16.mxu0 0
    %292 = vmatpush1.bf16.msra.mxu0 0
    %293 = vmatprep.mubr.bf16.mxu0 0
    %294 = vmatmul.mubr.bf16.gmra.mrb[0].mxu0 %v259
    %v295 = vpop.f32.mrb[0].mxu0
    %v296 = vadd.f32 0.0, %v295
    %v297 = vpop.f32.mrb[0].mxu0
    %v298 = vpop.f32.mrb[0].mxu0
    %v299 = vpop.f32.mrb[0].mxu0
    %300 = vdwg.mxu0
    %v302 = vrot.slane %v296, 6
    %v304 = vadd.f32 %v140, %v302
    %v305 = vtanh.pop %v304
    %vm306 = vcmask 256002
    %307 = vst.msk [vmem:[#allocation2] sm:$0x4] %vm306, %v305
    %v308 = vpack.c.bf16 %v305, %v305
    %v310 = vrot.slane %v308, 1
    %v312 = vsel %vm155, %v310, 0
    %314 = vmatprep.subr.bf16.mxu0 0
    %315 = vmatpush1.bf16.msra.mxu0 %v151
    %316 = vmatprep.subr.bf16.mxu0 0
    %317 = vmatpush1.bf16.msra.mxu0 %v152
    %318 = vmatprep.subr.bf16.mxu0 0
    %319 = vmatpush1.bf16.msra.mxu0 0
    %320 = vmatprep.subr.bf16.mxu0 0
    %321 = vmatpush1.bf16.msra.mxu0 0
    %322 = vmatprep.subr.bf16.mxu0 0
    %323 = vmatpush1.bf16.msra.mxu0 0
    %324 = vmatprep.subr.bf16.mxu0 0
    %325 = vmatpush1.bf16.msra.mxu0 0
    %326 = vmatprep.subr.bf16.mxu0 0
    %327 = vmatpush1.bf16.msra.mxu0 0
    %328 = vmatprep.subr.bf16.mxu0 0
    %329 = vmatpush1.bf16.msra.mxu0 0
    %330 = vmatprep.subr.bf16.mxu0 0
    %331 = vmatpush1.bf16.msra.mxu0 0
    %332 = vmatprep.subr.bf16.mxu0 0
    %333 = vmatpush1.bf16.msra.mxu0 0
    %334 = vmatprep.subr.bf16.mxu0 0
    %335 = vmatpush1.bf16.msra.mxu0 0
    %336 = vmatprep.subr.bf16.mxu0 0
    %337 = vmatpush1.bf16.msra.mxu0 0
    %338 = vmatprep.subr.bf16.mxu0 0
    %339 = vmatpush1.bf16.msra.mxu0 0
    %340 = vmatprep.subr.bf16.mxu0 0
    %341 = vmatpush1.bf16.msra.mxu0 0
    %342 = vmatprep.subr.bf16.mxu0 0
    %343 = vmatpush1.bf16.msra.mxu0 0
    %344 = vmatprep.subr.bf16.mxu0 0
    %345 = vmatpush1.bf16.msra.mxu0 0
    %346 = vmatprep.mubr.bf16.mxu0 0
    %347 = vmatmul.mubr.bf16.gmra.mrb[0].mxu0 %v312
    %v348 = vpop.f32.mrb[0].mxu0
    %v349 = vadd.f32 0.0, %v348
    %v350 = vpop.f32.mrb[0].mxu0
    %v351 = vpop.f32.mrb[0].mxu0
    %v352 = vpop.f32.mrb[0].mxu0
    %353 = vdwg.mxu0
    %v355 = vrot.slane %v349, 5
    %v357 = vadd.f32 %v140, %v355
    %v358 = vtanh.pop %v357
    %vm359 = vcmask 257027
    %360 = vst.msk [vmem:[#allocation2] sm:$0x8] %vm359, %v358
    %v361 = vpack.c.bf16 %v358, %v358
    %v363 = vshrl.u32 %v361, 16
    %v365 = vrot.slane %v363, 1
    %v367 = vsel %vm155, %v365, 0
    %369 = vmatprep.subr.bf16.mxu0 0
    %370 = vmatpush1.bf16.msra.mxu0 %v151
    %371 = vmatprep.subr.bf16.mxu0 0
    %372 = vmatpush1.bf16.msra.mxu0 %v152
    %373 = vmatprep.subr.bf16.mxu0 0
    %374 = vmatpush1.bf16.msra.mxu0 0
    %375 = vmatprep.subr.bf16.mxu0 0
    %376 = vmatpush1.bf16.msra.mxu0 0
    %377 = vmatprep.subr.bf16.mxu0 0
    %378 = vmatpush1.bf16.msra.mxu0 0
    %379 = vmatprep.subr.bf16.mxu0 0
    %380 = vmatpush1.bf16.msra.mxu0 0
    %381 = vmatprep.subr.bf16.mxu0 0
    %382 = vmatpush1.bf16.msra.mxu0 0
    %383 = vmatprep.subr.bf16.mxu0 0
    %384 = vmatpush1.bf16.msra.mxu0 0
    %385 = vmatprep.subr.bf16.mxu0 0
    %386 = vmatpush1.bf16.msra.mxu0 0
    %387 = vmatprep.subr.bf16.mxu0 0
    %388 = vmatpush1.bf16.msra.mxu0 0
    %389 = vmatprep.subr.bf16.mxu0 0
    %390 = vmatpush1.bf16.msra.mxu0 0
    %391 = vmatprep.subr.bf16.mxu0 0
    %392 = vmatpush1.bf16.msra.mxu0 0
    %393 = vmatprep.subr.bf16.mxu0 0
    %394 = vmatpush1.bf16.msra.mxu0 0
    %395 = vmatprep.subr.bf16.mxu0 0
    %396 = vmatpush1.bf16.msra.mxu0 0
    %397 = vmatprep.subr.bf16.mxu0 0
    %398 = vmatpush1.bf16.msra.mxu0 0
    %399 = vmatprep.subr.bf16.mxu0 0
    %400 = vmatpush1.bf16.msra.mxu0 0
    %401 = vmatprep.mubr.bf16.mxu0 0
    %402 = vmatmul.mubr.bf16.gmra.mrb[0].mxu0 %v367
    %v403 = vpop.f32.mrb[0].mxu0
    %v404 = vadd.f32 0.0, %v403
    %v405 = vpop.f32.mrb[0].mxu0
    %v406 = vpop.f32.mrb[0].mxu0
    %v407 = vpop.f32.mrb[0].mxu0
    %408 = vdwg.mxu0
    %v410 = vrot.slane %v404, 4
    %v412 = vadd.f32 %v140, %v410
    %v413 = vtanh.pop %v412
    %vm414 = vcmask 258052
    %415 = vst.msk [vmem:[#allocation2] sm:$0x10] %vm414, %v413
    %v416 = vpack.c.bf16 %v413, %v413
    %v418 = vrot.slane %v416, 2
    %v420 = vsel %vm155, %v418, 0
    %422 = vmatprep.subr.bf16.mxu0 0
    %423 = vmatpush1.bf16.msra.mxu0 %v151
    %424 = vmatprep.subr.bf16.mxu0 0
    %425 = vmatpush1.bf16.msra.mxu0 %v152
    %426 = vmatprep.subr.bf16.mxu0 0
    %427 = vmatpush1.bf16.msra.mxu0 0
    %428 = vmatprep.subr.bf16.mxu0 0
    %429 = vmatpush1.bf16.msra.mxu0 0
    %430 = vmatprep.subr.bf16.mxu0 0
    %431 = vmatpush1.bf16.msra.mxu0 0
    %432 = vmatprep.subr.bf16.mxu0 0
    %433 = vmatpush1.bf16.msra.mxu0 0
    %434 = vmatprep.subr.bf16.mxu0 0
    %435 = vmatpush1.bf16.msra.mxu0 0
    %436 = vmatprep.subr.bf16.mxu0 0
    %437 = vmatpush1.bf16.msra.mxu0 0
    %438 = vmatprep.subr.bf16.mxu0 0
    %439 = vmatpush1.bf16.msra.mxu0 0
    %440 = vmatprep.subr.bf16.mxu0 0
    %441 = vmatpush1.bf16.msra.mxu0 0
    %442 = vmatprep.subr.bf16.mxu0 0
    %443 = vmatpush1.bf16.msra.mxu0 0
    %444 = vmatprep.subr.bf16.mxu0 0
    %445 = vmatpush1.bf16.msra.mxu0 0
    %446 = vmatprep.subr.bf16.mxu0 0
    %447 = vmatpush1.bf16.msra.mxu0 0
    %448 = vmatprep.subr.bf16.mxu0 0
    %449 = vmatpush1.bf16.msra.mxu0 0
    %450 = vmatprep.subr.bf16.mxu0 0
    %451 = vmatpush1.bf16.msra.mxu0 0
    %452 = vmatprep.subr.bf16.mxu0 0
    %453 = vmatpush1.bf16.msra.mxu0 0
    %454 = vmatprep.mubr.bf16.mxu0 0
    %455 = vmatmul.mubr.bf16.gmra.mrb[0].mxu0 %v420
    %v456 = vpop.f32.mrb[0].mxu0
    %v457 = vadd.f32 0.0, %v456
    %v458 = vpop.f32.mrb[0].mxu0
    %v459 = vpop.f32.mrb[0].mxu0
    %v460 = vpop.f32.mrb[0].mxu0
    %461 = vdwg.mxu0
    %v463 = vrot.slane %v457, 3
    %v465 = vadd.f32 %v140, %v463
    %v466 = vtanh.pop %v465
    %vm467 = vcmask 259077
    %468 = vst.msk [vmem:[#allocation2] sm:$0x20] %vm467, %v466
    %v469 = vpack.c.bf16 %v466, %v466
    %v471 = vshrl.u32 %v469, 16
    %v473 = vrot.slane %v471, 2
    %v475 = vsel %vm155, %v473, 0
    %477 = vmatprep.subr.bf16.mxu0 0
    %478 = vmatpush1.bf16.msra.mxu0 %v151
    %479 = vmatprep.subr.bf16.mxu0 0
    %480 = vmatpush1.bf16.msra.mxu0 %v152
    %481 = vmatprep.subr.bf16.mxu0 0
    %482 = vmatpush1.bf16.msra.mxu0 0
    %483 = vmatprep.subr.bf16.mxu0 0
    %484 = vmatpush1.bf16.msra.mxu0 0
    %485 = vmatprep.subr.bf16.mxu0 0
    %486 = vmatpush1.bf16.msra.mxu0 0
    %487 = vmatprep.subr.bf16.mxu0 0
    %488 = vmatpush1.bf16.msra.mxu0 0
    %489 = vmatprep.subr.bf16.mxu0 0
    %490 = vmatpush1.bf16.msra.mxu0 0
    %491 = vmatprep.subr.bf16.mxu0 0
    %492 = vmatpush1.bf16.msra.mxu0 0
    %493 = vmatprep.subr.bf16.mxu0 0
    %494 = vmatpush1.bf16.msra.mxu0 0
    %495 = vmatprep.subr.bf16.mxu0 0
    %496 = vmatpush1.bf16.msra.mxu0 0
    %497 = vmatprep.subr.bf16.mxu0 0
    %498 = vmatpush1.bf16.msra.mxu0 0
    %499 = vmatprep.subr.bf16.mxu0 0
    %500 = vmatpush1.bf16.msra.mxu0 0
    %501 = vmatprep.subr.bf16.mxu0 0
    %502 = vmatpush1.bf16.msra.mxu0 0
    %503 = vmatprep.subr.bf16.mxu0 0
    %504 = vmatpush1.bf16.msra.mxu0 0
    %505 = vmatprep.subr.bf16.mxu0 0
    %506 = vmatpush1.bf16.msra.mxu0 0
    %507 = vmatprep.subr.bf16.mxu0 0
    %508 = vmatpush1.bf16.msra.mxu0 0
    %509 = vmatprep.mubr.bf16.mxu0 0
    %510 = vmatmul.mubr.bf16.gmra.mrb[0].mxu0 %v475
    %v511 = vpop.f32.mrb[0].mxu0
    %v512 = vadd.f32 0.0, %v511
    %v513 = vpop.f32.mrb[0].mxu0
    %v514 = vpop.f32.mrb[0].mxu0
    %v515 = vpop.f32.mrb[0].mxu0
    %516 = vdwg.mxu0
    %v518 = vrot.slane %v512, 2
    %v520 = vadd.f32 %v140, %v518
    %v521 = vtanh.pop %v520
    %vm522 = vcmask 260102
    %523 = vst.msk [vmem:[#allocation2] sm:$0x40] %vm522, %v521
    %v524 = vpack.c.bf16 %v521, %v521
    %v526 = vrot.slane %v524, 3
    %v528 = vsel %vm155, %v526, 0
    %530 = vmatprep.subr.bf16.mxu0 0
    %531 = vmatpush1.bf16.msra.mxu0 %v151
    %532 = vmatprep.subr.bf16.mxu0 0
    %533 = vmatpush1.bf16.msra.mxu0 %v152
    %534 = vmatprep.subr.bf16.mxu0 0
    %535 = vmatpush1.bf16.msra.mxu0 0
    %536 = vmatprep.subr.bf16.mxu0 0
    %537 = vmatpush1.bf16.msra.mxu0 0
    %538 = vmatprep.subr.bf16.mxu0 0
    %539 = vmatpush1.bf16.msra.mxu0 0
    %540 = vmatprep.subr.bf16.mxu0 0
    %541 = vmatpush1.bf16.msra.mxu0 0
    %542 = vmatprep.subr.bf16.mxu0 0
    %543 = vmatpush1.bf16.msra.mxu0 0
    %544 = vmatprep.subr.bf16.mxu0 0
    %545 = vmatpush1.bf16.msra.mxu0 0
    %546 = vmatprep.subr.bf16.mxu0 0
    %547 = vmatpush1.bf16.msra.mxu0 0
    %548 = vmatprep.subr.bf16.mxu0 0
    %549 = vmatpush1.bf16.msra.mxu0 0
    %550 = vmatprep.subr.bf16.mxu0 0
    %551 = vmatpush1.bf16.msra.mxu0 0
    %552 = vmatprep.subr.bf16.mxu0 0
    %553 = vmatpush1.bf16.msra.mxu0 0
    %554 = vmatprep.subr.bf16.mxu0 0
    %555 = vmatpush1.bf16.msra.mxu0 0
    %556 = vmatprep.subr.bf16.mxu0 0
    %557 = vmatpush1.bf16.msra.mxu0 0
    %558 = vmatprep.subr.bf16.mxu0 0
    %559 = vmatpush1.bf16.msra.mxu0 0
    %560 = vmatprep.subr.bf16.mxu0 0
    %561 = vmatpush1.bf16.msra.mxu0 0
    %562 = vmatprep.mubr.bf16.mxu0 0
    %563 = vmatmul.mubr.bf16.gmra.mrb[0].mxu0 %v528
    %v564 = vpop.f32.mrb[0].mxu0
    %v565 = vadd.f32 0.0, %v564
    %v566 = vpop.f32.mrb[0].mxu0
    %v567 = vpop.f32.mrb[0].mxu0
    %v568 = vpop.f32.mrb[0].mxu0
    %569 = vdwg.mxu0
    %v571 = vrot.slane %v565, 1
    %v573 = vadd.f32 %v140, %v571
    %v574 = vtanh.pop %v573
    %vm575 = vcmask 261127
    %576 = vst.msk [vmem:[#allocation2] sm:$0x80] %vm575, %v574
    %v577 = vpack.c.bf16 %v574, %v574
    %v578 = vld [vmem:[#allocation2] sm:$0xff]
    %v579 = vpack.c.bf16 %v578, %v578
    %v581 = vlaneseq
    %v582 = vshrl.u32 %v581, 7
    %v583 = vsub.s32 0, %v582
    %v584 = vrot.slane %v57, %v583
    %586 = vrot.lane.b32.xlu0 %v151, 96
    %v587 = vpop.permute.xlu0 %586
    %588 = vrot.lane.b32.xlu0 %v152, 96
    %v589 = vpop.permute.xlu0 %588
    %v593 = vsel %vm155, %v579, 0
    %595 = vmatprep.subr.bf16.mxu0 0
    %596 = vmatpush1.bf16.msra.mxu0 %v587
    %597 = vmatprep.subr.bf16.mxu0 0
    %598 = vmatpush1.bf16.msra.mxu0 %v589
    %599 = vmatprep.subr.bf16.mxu0 0
    %600 = vmatpush1.bf16.msra.mxu0 0
    %601 = vmatprep.subr.bf16.mxu0 0
    %602 = vmatpush1.bf16.msra.mxu0 0
    %603 = vmatprep.subr.bf16.mxu0 0
    %604 = vmatpush1.bf16.msra.mxu0 0
    %605 = vmatprep.subr.bf16.mxu0 0
    %606 = vmatpush1.bf16.msra.mxu0 0
    %607 = vmatprep.subr.bf16.mxu0 0
    %608 = vmatpush1.bf16.msra.mxu0 0
    %609 = vmatprep.subr.bf16.mxu0 0
    %610 = vmatpush1.bf16.msra.mxu0 0
    %611 = vmatprep.subr.bf16.mxu0 0
    %612 = vmatpush1.bf16.msra.mxu0 0
    %613 = vmatprep.subr.bf16.mxu0 0
    %614 = vmatpush1.bf16.msra.mxu0 0
    %615 = vmatprep.subr.bf16.mxu0 0
    %616 = vmatpush1.bf16.msra.mxu0 0
    %617 = vmatprep.subr.bf16.mxu0 0
    %618 = vmatpush1.bf16.msra.mxu0 0
    %619 = vmatprep.subr.bf16.mxu0 0
    %620 = vmatpush1.bf16.msra.mxu0 0
    %621 = vmatprep.subr.bf16.mxu0 0
    %622 = vmatpush1.bf16.msra.mxu0 0
    %623 = vmatprep.subr.bf16.mxu0 0
    %624 = vmatpush1.bf16.msra.mxu0 0
    %625 = vmatprep.subr.bf16.mxu0 0
    %626 = vmatpush1.bf16.msra.mxu0 0
    %627 = vmatprep.mubr.bf16.mxu0 0
    %628 = vmatmul.mubr.bf16.gmra.mrb[0].mxu0 %v593
    %v629 = vpop.f32.mrb[0].mxu0
    %v630 = vadd.f32 %v584, %v629
    %v631 = vpop.f32.mrb[0].mxu0
    %v632 = vpop.f32.mrb[0].mxu0
    %v633 = vpop.f32.mrb[0].mxu0
    %634 = vdwg.mxu0
    %v635 = vmul.f32 %v578, %v578
    %v636 = vsel %vm155, %v635, 0.0
    %637 = vadd.xlane.f32.xlu0 %v636
    %v638 = vpop.xlane.xlu0 %637
    %v639 = vrsqrt.pop %v638
    %v640 = vmul.f32 %v638, %v639
    %vm641 = vcmp.eq.f32.partialorder %v638, inf
    %v642 = vsel %vm641, %v638, %v640
    %vm643 = vcmp.eq.f32.partialorder %v638, 0.0
    %v644 = vand.u32 %v638, 2147483648
    %v645 = vsel %vm643, %v644, %v642
    %v646 = vlaneseq
    %v647 = vshrl.u32 %v646, 7
    %vm648 = vcmp.eq.s32.totalorder %v647, %v59
    %v650 = vshrl.u32 %v577, 16
    %v652 = vrot.slane %v650, 3
    %v657 = vunpack.c.l.b16 %v53
    %v658 = vunpack.c.h.b16 %v53
    %v659 = vunpack.c.l.b16 %v54
    %v660 = vunpack.c.h.b16 %v54
    %v661 = vunpack.c.l.b16 %v55
    %v662 = vunpack.c.h.b16 %v55
    %v663 = vunpack.c.l.b16 %v56
    %v664 = vunpack.c.h.b16 %v56
    %v665 = vpack.c.b16 %v659, %v657
    %v666 = vpack.c.b16 %v660, %v658
    %v667 = vpack.c.b16 %v663, %v661
    %v668 = vpack.c.b16 %v664, %v662
    %669 = vrot.lane.b32.xlu0 %v665, 32
    %v670 = vpop.permute.xlu0 %669
    %671 = vrot.lane.b32.xlu0 %v666, 32
    %v672 = vpop.permute.xlu0 %671
    %673 = vrot.lane.b32.xlu0 %v667, 32
    %v674 = vpop.permute.xlu0 %673
    %675 = vrot.lane.b32.xlu0 %v668, 32
    %v676 = vpop.permute.xlu0 %675
    %vm677 = vcmask 261120
    %v678 = vsel %vm677, %v670, %v672
    %v679 = vsel %vm677, %v674, %v676
    %v683 = vsel %vm155, %v652, 0
    %685 = vmatprep.subr.bf16.mxu0 0
    %686 = vmatpush1.bf16.msra.mxu0 %v678
    %687 = vmatprep.subr.bf16.mxu0 0
    %688 = vmatpush1.bf16.msra.mxu0 %v679
    %689 = vmatprep.subr.bf16.mxu0 0
    %690 = vmatpush1.bf16.msra.mxu0 0
    %691 = vmatprep.subr.bf16.mxu0 0
    %692 = vmatpush1.bf16.msra.mxu0 0
    %693 = vmatprep.subr.bf16.mxu0 0
    %694 = vmatpush1.bf16.msra.mxu0 0
    %695 = vmatprep.subr.bf16.mxu0 0
    %696 = vmatpush1.bf16.msra.mxu0 0
    %697 = vmatprep.subr.bf16.mxu0 0
    %698 = vmatpush1.bf16.msra.mxu0 0
    %699 = vmatprep.subr.bf16.mxu0 0
    %700 = vmatpush1.bf16.msra.mxu0 0
    %701 = vmatprep.subr.bf16.mxu0 0
    %702 = vmatpush1.bf16.msra.mxu0 0
    %703 = vmatprep.subr.bf16.mxu0 0
    %704 = vmatpush1.bf16.msra.mxu0 0
    %705 = vmatprep.subr.bf16.mxu0 0
    %706 = vmatpush1.bf16.msra.mxu0 0
    %707 = vmatprep.subr.bf16.mxu0 0
    %708 = vmatpush1.bf16.msra.mxu0 0
    %709 = vmatprep.subr.bf16.mxu0 0
    %710 = vmatpush1.bf16.msra.mxu0 0
    %711 = vmatprep.subr.bf16.mxu0 0
    %712 = vmatpush1.bf16.msra.mxu0 0
    %713 = vmatprep.subr.bf16.mxu0 0
    %714 = vmatpush1.bf16.msra.mxu0 0
    %715 = vmatprep.subr.bf16.mxu0 0
    %716 = vmatpush1.bf16.msra.mxu0 0
    %717 = vmatprep.mubr.bf16.mxu0 0
    %718 = vmatmul.mubr.bf16.gmra.mrb[0].mxu0 %v683
    %v719 = vpop.f32.mrb[0].mxu0
    %v720 = vadd.f32 0.0, %v719
    %v721 = vpop.f32.mrb[0].mxu0
    %v722 = vpop.f32.mrb[0].mxu0
    %v723 = vpop.f32.mrb[0].mxu0
    %724 = vdwg.mxu0
    %v725 = vadd.f32 %v720, %v57
    %726 = vset.pattern.permute.xlu0 66
    %727 = vperm.xlu0 %726, %v57
    %v728 = vpop.permute.xlu0 %727
    %v730 = vlaneseq
    %v731 = vshrl.u32 %v730, 7
    %v732 = vsub.s32 0, %v731
    %v733 = vrot.slane %v728, %v732
    %v734 = vmul.f32 %v733, %v57
    %v736 = vlaneseq
    %v737 = vshrl.u32 %v736, 7
    %v738 = vsub.s32 0, %v737
    %v739 = vrot.slane %v734, %v738
    %740 = vrot.lane.b32.xlu0 %v739, 92
    %v741 = vpop.permute.xlu0 %740
    %v743 = vadd.f32 %v725, %v741
    %744 = vset.pattern.permute.xlu0 67
    %745 = vperm.xlu0 %744, %v57
    %v746 = vpop.permute.xlu0 %745
    %v748 = vlaneseq
    %v749 = vshrl.u32 %v748, 7
    %v750 = vsub.s32 0, %v749
    %v751 = vrot.slane %v746, %v750
    %v752 = vmul.f32 %v751, %v57
    %v754 = vlaneseq
    %v755 = vshrl.u32 %v754, 7
    %v756 = vsub.s32 0, %v755
    %v757 = vrot.slane %v752, %v756
    %v758 = vlaneseq
    %v759 = vshrl.u32 %v758, 7
    %v760 = vsub.s32 1, %v759
    %v761 = vrot.slane %v752, %v760
    %762 = vrot.lane.b32.xlu0 %v757, 60
    %v763 = vpop.permute.xlu0 %762
    %764 = vrot.lane.b32.xlu0 %v761, 60
    %v765 = vpop.permute.xlu0 %764
    %vm766 = vcmask 490496
    %v767 = vsel %vm766, %v763, %v765
    %v769 = vadd.f32 %v743, %v767
    %v770 = vlaneseq
    %v771 = vshrl.u32 %v770, 7
    %v772 = vsub.s32 0, %v771
    %v773 = vrot.slane %v720, %v772
    %v774 = vadd.f32 %v773, %v630
    %v775 = vtanh.pop %v774
    %v776 = vsel %vm155, %v775, 0.0
    %777 = vadd.xlane.f32.xlu0 %v776
    %v778 = vpop.xlane.xlu0 %777
    %v779 = vmul.f32 %v778, 1.442695
    %v780 = vpow.pop %v779
    %v781 = vrot.slane %v780, 4
    %v782 = vadd.f32 %v780, %v781
    %v783 = vrot.slane %v782, 2
    %v784 = vadd.f32 %v782, %v783
    %v785 = vrot.slane %v784, 1
    %v786 = vadd.f32 %v784, %v785
    %v787 = vrcp.pop %v786
    %v788 = vmul.f32 %v780, %v787
    %v789 = vmul.f32 %v788, %v578
    %v790 = vsel %vm155, %v789, 0.0
    %v791 = vrot.slane %v790, 4
    %v792 = vadd.f32 %v790, %v791
    %v793 = vrot.slane %v792, 2
    %v794 = vadd.f32 %v792, %v793
    %v795 = vrot.slane %v794, 1
    %v796 = vadd.f32 %v794, %v795
    %v797 = vmul.f32 %v788, %v645
    %vm798 = vcmask 7168
    %799 = vst.msk [vmem:[#allocation3] sm:$0xff] %vm798, %v797
    %v800 = vpack.c.bf16 %v796, %v796
    %801 = vrot.lane.b32.xlu0 %v151, 64
    %v802 = vpop.permute.xlu0 %801
    %803 = vrot.lane.b32.xlu0 %v152, 64
    %v804 = vpop.permute.xlu0 %803
    %808 = vrot.lane.b32.xlu0 %v769, 96
    %v809 = vpop.permute.xlu0 %808
    %v812 = vsel %vm155, %v800, 0
    %814 = vmatprep.subr.bf16.mxu0 0
    %815 = vmatpush1.bf16.msra.mxu0 %v802
    %816 = vmatprep.subr.bf16.mxu0 0
    %817 = vmatpush1.bf16.msra.mxu0 %v804
    %818 = vmatprep.subr.bf16.mxu0 0
    %819 = vmatpush1.bf16.msra.mxu0 0
    %820 = vmatprep.subr.bf16.mxu0 0
    %821 = vmatpush1.bf16.msra.mxu0 0
    %822 = vmatprep.subr.bf16.mxu0 0
    %823 = vmatpush1.bf16.msra.mxu0 0
    %824 = vmatprep.subr.bf16.mxu0 0
    %825 = vmatpush1.bf16.msra.mxu0 0
    %826 = vmatprep.subr.bf16.mxu0 0
    %827 = vmatpush1.bf16.msra.mxu0 0
    %828 = vmatprep.subr.bf16.mxu0 0
    %829 = vmatpush1.bf16.msra.mxu0 0
    %830 = vmatprep.subr.bf16.mxu0 0
    %831 = vmatpush1.bf16.msra.mxu0 0
    %832 = vmatprep.subr.bf16.mxu0 0
    %833 = vmatpush1.bf16.msra.mxu0 0
    %834 = vmatprep.subr.bf16.mxu0 0
    %835 = vmatpush1.bf16.msra.mxu0 0
    %836 = vmatprep.subr.bf16.mxu0 0
    %837 = vmatpush1.bf16.msra.mxu0 0
    %838 = vmatprep.subr.bf16.mxu0 0
    %839 = vmatpush1.bf16.msra.mxu0 0
    %840 = vmatprep.subr.bf16.mxu0 0
    %841 = vmatpush1.bf16.msra.mxu0 0
    %842 = vmatprep.subr.bf16.mxu0 0
    %843 = vmatpush1.bf16.msra.mxu0 0
    %844 = vmatprep.subr.bf16.mxu0 0
    %845 = vmatpush1.bf16.msra.mxu0 0
    %846 = vmatprep.mubr.bf16.mxu0 0
    %847 = vmatmul.mubr.bf16.gmra.mrb[0].mxu0 %v812
    %v848 = vpop.f32.mrb[0].mxu0
    %v849 = vadd.f32 %v809, %v848
    %v850 = vpop.f32.mrb[0].mxu0
    %v851 = vpop.f32.mrb[0].mxu0
    %v852 = vpop.f32.mrb[0].mxu0
    %853 = vdwg.mxu0
    %v854 = vtanh.pop %v849
    %v855 = vpack.c.bf16 %v854, %v854
    %v857 = vsel %vm155, %v855, 0
    %859 = vmatprep.subr.bf16.mxu0 0
    %860 = vmatpush1.bf16.msra.mxu0 %v678
    %861 = vmatprep.subr.bf16.mxu0 0
    %862 = vmatpush1.bf16.msra.mxu0 %v679
    %863 = vmatprep.subr.bf16.mxu0 0
    %864 = vmatpush1.bf16.msra.mxu0 0
    %865 = vmatprep.subr.bf16.mxu0 0
    %866 = vmatpush1.bf16.msra.mxu0 0
    %867 = vmatprep.subr.bf16.mxu0 0
    %868 = vmatpush1.bf16.msra.mxu0 0
    %869 = vmatprep.subr.bf16.mxu0 0
    %870 = vmatpush1.bf16.msra.mxu0 0
    %871 = vmatprep.subr.bf16.mxu0 0
    %872 = vmatpush1.bf16.msra.mxu0 0
    %873 = vmatprep.subr.bf16.mxu0 0
    %874 = vmatpush1.bf16.msra.mxu0 0
    %875 = vmatprep.subr.bf16.mxu0 0
    %876 = vmatpush1.bf16.msra.mxu0 0
    %877 = vmatprep.subr.bf16.mxu0 0
    %878 = vmatpush1.bf16.msra.mxu0 0
    %879 = vmatprep.subr.bf16.mxu0 0
    %880 = vmatpush1.bf16.msra.mxu0 0
    %881 = vmatprep.subr.bf16.mxu0 0
    %882 = vmatpush1.bf16.msra.mxu0 0
    %883 = vmatprep.subr.bf16.mxu0 0
    %884 = vmatpush1.bf16.msra.mxu0 0
    %885 = vmatprep.subr.bf16.mxu0 0
    %886 = vmatpush1.bf16.msra.mxu0 0
    %887 = vmatprep.subr.bf16.mxu0 0
    %888 = vmatpush1.bf16.msra.mxu0 0
    %889 = vmatprep.subr.bf16.mxu0 0
    %890 = vmatpush1.bf16.msra.mxu0 0
    %891 = vmatprep.mubr.bf16.mxu0 0
    %892 = vmatmul.mubr.bf16.gmra.mrb[0].mxu0 %v857
    %v893 = vpop.f32.mrb[0].mxu0
    %v894 = vadd.f32 0.0, %v893
    %v895 = vpop.f32.mrb[0].mxu0
    %v896 = vpop.f32.mrb[0].mxu0
    %v897 = vpop.f32.mrb[0].mxu0
    %898 = vdwg.mxu0
    %v899 = vadd.f32 %v894, %v57
    %901 = vrot.lane.b32.xlu0 %v899, 64
    %v902 = vpop.permute.xlu0 %901
    %vm904 = vcmask 8192
    %905 = vst.msk [vmem:[%s4] sm:$0x1] %vm904, %v902
    %906 = vset.pattern.permute.xlu0 64
    %907 = vperm.xlu0 %906, %v899
    %v908 = vpop.permute.xlu0 %907
    %910 = vrot.lane.b32.xlu0 %v584, 60
    %v911 = vpop.permute.xlu0 %910
    %v913 = vmul.f32 %v908, %v911
    %915 = vrot.lane.b32.xlu0 %v913, 32
    %v916 = vpop.permute.xlu0 %915
    %v918 = vadd.f32 %v899, %v916
    %919 = vset.pattern.permute.xlu0 65
    %920 = vperm.xlu0 %919, %v899
    %v921 = vpop.permute.xlu0 %920
    %v923 = vlaneseq
    %v924 = vshrl.u32 %v923, 7
    %v925 = vsub.s32 1, %v924
    %v926 = vrot.slane %v57, %v925
    %927 = vrot.lane.b32.xlu0 %v584, 28
    %v928 = vpop.permute.xlu0 %927
    %929 = vrot.lane.b32.xlu0 %v926, 28
    %v930 = vpop.permute.xlu0 %929
    %vm931 = vcmask 228352
    %v932 = vsel %vm931, %v928, %v930
    %v934 = vmul.f32 %v921, %v932
    %936 = vrot.lane.b32.xlu0 %v934, 32
    %v937 = vpop.permute.xlu0 %936
    %v939 = vadd.f32 %v918, %v937
    %v940 = vlaneseq
    %v941 = vshrl.u32 %v940, 7
    %v942 = vsub.s32 0, %v941
    %v943 = vrot.slane %v894, %v942
    %v944 = vadd.f32 %v943, %v630
    %v945 = vtanh.pop %v944
    %v946 = vsel %vm155, %v945, 0.0
    %947 = vadd.xlane.f32.xlu0 %v946
    %v948 = vpop.xlane.xlu0 %947
    %v949 = vmul.f32 %v948, 1.442695
    %v950 = vpow.pop %v949
    %v951 = vrot.slane %v950, 4
    %v952 = vadd.f32 %v950, %v951
    %v953 = vrot.slane %v952, 2
    %v954 = vadd.f32 %v952, %v953
    %v955 = vrot.slane %v954, 1
    %v956 = vadd.f32 %v954, %v955
    %v957 = vrcp.pop %v956
    %v958 = vmul.f32 %v950, %v957
    %v959 = vmul.f32 %v958, %v578
    %v960 = vsel %vm155, %v959, 0.0
    %v961 = vrot.slane %v960, 4
    %v962 = vadd.f32 %v960, %v961
    %v963 = vrot.slane %v962, 2
    %v964 = vadd.f32 %v962, %v963
    %v965 = vrot.slane %v964, 1
    %v966 = vadd.f32 %v964, %v965
    %v967 = vmul.f32 %v958, %v645
    %vm968 = vcmask 15368
    %969 = vst.msk [vmem:[#allocation3] sm:$0xff] %vm968, %v967
    %v970 = vpack.c.bf16 %v966, %v966
    %972 = vrot.lane.b32.xlu0 %v939, 96
    %v973 = vpop.permute.xlu0 %972
    %v976 = vsel %vm155, %v970, 0
    %978 = vmatprep.subr.bf16.mxu0 0
    %979 = vmatpush1.bf16.msra.mxu0 %v802
    %980 = vmatprep.subr.bf16.mxu0 0
    %981 = vmatpush1.bf16.msra.mxu0 %v804
    %982 = vmatprep.subr.bf16.mxu0 0
    %983 = vmatpush1.bf16.msra.mxu0 0
    %984 = vmatprep.subr.bf16.mxu0 0
    %985 = vmatpush1.bf16.msra.mxu0 0
    %986 = vmatprep.subr.bf16.mxu0 0
    %987 = vmatpush1.bf16.msra.mxu0 0
    %988 = vmatprep.subr.bf16.mxu0 0
    %989 = vmatpush1.bf16.msra.mxu0 0
    %990 = vmatprep.subr.bf16.mxu0 0
    %991 = vmatpush1.bf16.msra.mxu0 0
    %992 = vmatprep.subr.bf16.mxu0 0
    %993 = vmatpush1.bf16.msra.mxu0 0
    %994 = vmatprep.subr.bf16.mxu0 0
    %995 = vmatpush1.bf16.msra.mxu0 0
    %996 = vmatprep.subr.bf16.mxu0 0
    %997 = vmatpush1.bf16.msra.mxu0 0
    %998 = vmatprep.subr.bf16.mxu0 0
    %999 = vmatpush1.bf16.msra.mxu0 0
    %1000 = vmatprep.subr.bf16.mxu0 0
    %1001 = vmatpush1.bf16.msra.mxu0 0
    %1002 = vmatprep.subr.bf16.mxu0 0
    %1003 = vmatpush1.bf16.msra.mxu0 0
    %1004 = vmatprep.subr.bf16.mxu0 0
    %1005 = vmatpush1.bf16.msra.mxu0 0
    %1006 = vmatprep.subr.bf16.mxu0 0
    %1007 = vmatpush1.bf16.msra.mxu0 0
    %1008 = vmatprep.subr.bf16.mxu0 0
    %1009 = vmatpush1.bf16.msra.mxu0 0
    %1010 = vmatprep.mubr.bf16.mxu0 0
    %1011 = vmatmul.mubr.bf16.gmra.mrb[0].mxu0 %v976
    %v1012 = vpop.f32.mrb[0].mxu0
    %v1013 = vadd.f32 %v973, %v1012
    %v1014 = vpop.f32.mrb[0].mxu0
    %v1015 = vpop.f32.mrb[0].mxu0
    %v1016 = vpop.f32.mrb[0].mxu0
    %1017 = vdwg.mxu0
    %v1018 = vtanh.pop %v1013
    %v1019 = vpack.c.bf16 %v1018, %v1018
    %v1021 = vsel %vm155, %v1019, 0
    %1023 = vmatprep.subr.bf16.mxu0 0
    %1024 = vmatpush1.bf16.msra.mxu0 %v678
    %1025 = vmatprep.subr.bf16.mxu0 0
    %1026 = vmatpush1.bf16.msra.mxu0 %v679
    %1027 = vmatprep.subr.bf16.mxu0 0
    %1028 = vmatpush1.bf16.msra.mxu0 0
    %1029 = vmatprep.subr.bf16.mxu0 0
    %1030 = vmatpush1.bf16.msra.mxu0 0
    %1031 = vmatprep.subr.bf16.mxu0 0
    %1032 = vmatpush1.bf16.msra.mxu0 0
    %1033 = vmatprep.subr.bf16.mxu0 0
    %1034 = vmatpush1.bf16.msra.mxu0 0
    %1035 = vmatprep.subr.bf16.mxu0 0
    %1036 = vmatpush1.bf16.msra.mxu0 0
    %1037 = vmatprep.subr.bf16.mxu0 0
    %1038 = vmatpush1.bf16.msra.mxu0 0
    %1039 = vmatprep.subr.bf16.mxu0 0
    %1040 = vmatpush1.bf16.msra.mxu0 0
    %1041 = vmatprep.subr.bf16.mxu0 0
    %1042 = vmatpush1.bf16.msra.mxu0 0
    %1043 = vmatprep.subr.bf16.mxu0 0
    %1044 = vmatpush1.bf16.msra.mxu0 0
    %1045 = vmatprep.subr.bf16.mxu0 0
    %1046 = vmatpush1.bf16.msra.mxu0 0
    %1047 = vmatprep.subr.bf16.mxu0 0
    %1048 = vmatpush1.bf16.msra.mxu0 0
    %1049 = vmatprep.subr.bf16.mxu0 0
    %1050 = vmatpush1.bf16.msra.mxu0 0
    %1051 = vmatprep.subr.bf16.mxu0 0
    %1052 = vmatpush1.bf16.msra.mxu0 0
    %1053 = vmatprep.subr.bf16.mxu0 0
    %1054 = vmatpush1.bf16.msra.mxu0 0
    %1055 = vmatprep.mubr.bf16.mxu0 0
    %1056 = vmatmul.mubr.bf16.gmra.mrb[0].mxu0 %v1021
    %v1057 = vpop.f32.mrb[0].mxu0
    %v1058 = vadd.f32 0.0, %v1057
    %v1059 = vpop.f32.mrb[0].mxu0
    %v1060 = vpop.f32.mrb[0].mxu0
    %v1061 = vpop.f32.mrb[0].mxu0
    %1062 = vdwg.mxu0
    %v1063 = vadd.f32 %v1058, %v57
    %1065 = vrot.lane.b32.xlu0 %v1063, 64
    %v1066 = vpop.permute.xlu0 %1065
    %1068 = vst.msk [vmem:[%s4 + $0x1] sm:$0x1] %vm904, %v1066
    %1069 = vset.pattern.permute.xlu0 64
    %1070 = vperm.xlu0 %1069, %v1063
    %v1071 = vpop.permute.xlu0 %1070
    %v1073 = vmul.f32 %v1071, %v911
    %1075 = vrot.lane.b32.xlu0 %v1073, 32
    %v1076 = vpop.permute.xlu0 %1075
    %v1078 = vadd.f32 %v1063, %v1076
    %1079 = vset.pattern.permute.xlu0 65
    %1080 = vperm.xlu0 %1079, %v1063
    %v1081 = vpop.permute.xlu0 %1080
    %v1083 = vmul.f32 %v1081, %v932
    %1085 = vrot.lane.b32.xlu0 %v1083, 32
    %v1086 = vpop.permute.xlu0 %1085
    %v1088 = vadd.f32 %v1078, %v1086
    %v1089 = vlaneseq
    %v1090 = vshrl.u32 %v1089, 7
    %v1091 = vsub.s32 0, %v1090
    %v1092 = vrot.slane %v1058, %v1091
    %v1093 = vadd.f32 %v1092, %v630
    %v1094 = vtanh.pop %v1093
    %v1095 = vsel %vm155, %v1094, 0.0
    %1096 = vadd.xlane.f32.xlu0 %v1095
    %v1097 = vpop.xlane.xlu0 %1096
    %v1098 = vmul.f32 %v1097, 1.442695
    %v1099 = vpow.pop %v1098
    %v1100 = vrot.slane %v1099, 4
    %v1101 = vadd.f32 %v1099, %v1100
    %v1102 = vrot.slane %v1101, 2
    %v1103 = vadd.f32 %v1101, %v1102
    %v1104 = vrot.slane %v1103, 1
    %v1105 = vadd.f32 %v1103, %v1104
    %v1106 = vrcp.pop %v1105
    %v1107 = vmul.f32 %v1099, %v1106
    %v1108 = vmul.f32 %v1107, %v578
    %v1109 = vsel %vm155, %v1108, 0.0
    %v1110 = vrot.slane %v1109, 4
    %v1111 = vadd.f32 %v1109, %v1110
    %v1112 = vrot.slane %v1111, 2
    %v1113 = vadd.f32 %v1111, %v1112
    %v1114 = vrot.slane %v1113, 1
    %v1115 = vadd.f32 %v1113, %v1114
    %v1116 = vmul.f32 %v1107, %v645
    %vm1117 = vcmask 23568
    %1118 = vst.msk [vmem:[#allocation3] sm:$0xff] %vm1117, %v1116
    %v1119 = vpack.c.bf16 %v1115, %v1115
    %1121 = vrot.lane.b32.xlu0 %v1088, 96
    %v1122 = vpop.permute.xlu0 %1121
    %v1125 = vsel %vm155, %v1119, 0
    %1127 = vmatprep.subr.bf16.mxu0 0
    %1128 = vmatpush1.bf16.msra.mxu0 %v802
    %1129 = vmatprep.subr.bf16.mxu0 0
    %1130 = vmatpush1.bf16.msra.mxu0 %v804
    %1131 = vmatprep.subr.bf16.mxu0 0
    %1132 = vmatpush1.bf16.msra.mxu0 0
    %1133 = vmatprep.subr.bf16.mxu0 0
    %1134 = vmatpush1.bf16.msra.mxu0 0
    %1135 = vmatprep.subr.bf16.mxu0 0
    %1136 = vmatpush1.bf16.msra.mxu0 0
    %1137 = vmatprep.subr.bf16.mxu0 0
    %1138 = vmatpush1.bf16.msra.mxu0 0
    %1139 = vmatprep.subr.bf16.mxu0 0
    %1140 = vmatpush1.bf16.msra.mxu0 0
    %1141 = vmatprep.subr.bf16.mxu0 0
    %1142 = vmatpush1.bf16.msra.mxu0 0
    %1143 = vmatprep.subr.bf16.mxu0 0
    %1144 = vmatpush1.bf16.msra.mxu0 0
    %1145 = vmatprep.subr.bf16.mxu0 0
    %1146 = vmatpush1.bf16.msra.mxu0 0
    %1147 = vmatprep.subr.bf16.mxu0 0
    %1148 = vmatpush1.bf16.msra.mxu0 0
    %1149 = vmatprep.subr.bf16.mxu0 0
    %1150 = vmatpush1.bf16.msra.mxu0 0
    %1151 = vmatprep.subr.bf16.mxu0 0
    %1152 = vmatpush1.bf16.msra.mxu0 0
    %1153 = vmatprep.subr.bf16.mxu0 0
    %1154 = vmatpush1.bf16.msra.mxu0 0
    %1155 = vmatprep.subr.bf16.mxu0 0
    %1156 = vmatpush1.bf16.msra.mxu0 0
    %1157 = vmatprep.subr.bf16.mxu0 0
    %1158 = vmatpush1.bf16.msra.mxu0 0
    %1159 = vmatprep.mubr.bf16.mxu0 0
    %1160 = vmatmul.mubr.bf16.gmra.mrb[0].mxu0 %v1125
    %v1161 = vpop.f32.mrb[0].mxu0
    %v1162 = vadd.f32 %v1122, %v1161
    %v1163 = vpop.f32.mrb[0].mxu0
    %v1164 = vpop.f32.mrb[0].mxu0
    %v1165 = vpop.f32.mrb[0].mxu0
    %1166 = vdwg.mxu0
    %v1167 = vtanh.pop %v1162
    %v1168 = vpack.c.bf16 %v1167, %v1167
    %v1170 = vsel %vm155, %v1168, 0
    %1172 = vmatprep.subr.bf16.mxu0 0
    %1173 = vmatpush1.bf16.msra.mxu0 %v678
    %1174 = vmatprep.subr.bf16.mxu0 0
    %1175 = vmatpush1.bf16.msra.mxu0 %v679
    %1176 = vmatprep.subr.bf16.mxu0 0
    %1177 = vmatpush1.bf16.msra.mxu0 0
    %1178 = vmatprep.subr.bf16.mxu0 0
    %1179 = vmatpush1.bf16.msra.mxu0 0
    %1180 = vmatprep.subr.bf16.mxu0 0
    %1181 = vmatpush1.bf16.msra.mxu0 0
    %1182 = vmatprep.subr.bf16.mxu0 0
    %1183 = vmatpush1.bf16.msra.mxu0 0
    %1184 = vmatprep.subr.bf16.mxu0 0
    %1185 = vmatpush1.bf16.msra.mxu0 0
    %1186 = vmatprep.subr.bf16.mxu0 0
    %1187 = vmatpush1.bf16.msra.mxu0 0
    %1188 = vmatprep.subr.bf16.mxu0 0
    %1189 = vmatpush1.bf16.msra.mxu0 0
    %1190 = vmatprep.subr.bf16.mxu0 0
    %1191 = vmatpush1.bf16.msra.mxu0 0
    %1192 = vmatprep.subr.bf16.mxu0 0
    %1193 = vmatpush1.bf16.msra.mxu0 0
    %1194 = vmatprep.subr.bf16.mxu0 0
    %1195 = vmatpush1.bf16.msra.mxu0 0
    %1196 = vmatprep.subr.bf16.mxu0 0
    %1197 = vmatpush1.bf16.msra.mxu0 0
    %1198 = vmatprep.subr.bf16.mxu0 0
    %1199 = vmatpush1.bf16.msra.mxu0 0
    %1200 = vmatprep.subr.bf16.mxu0 0
    %1201 = vmatpush1.bf16.msra.mxu0 0
    %1202 = vmatprep.subr.bf16.mxu0 0
    %1203 = vmatpush1.bf16.msra.mxu0 0
    %1204 = vmatprep.mubr.bf16.mxu0 0
    %1205 = vmatmul.mubr.bf16.gmra.mrb[0].mxu0 %v1170
    %v1206 = vpop.f32.mrb[0].mxu0
    %v1207 = vadd.f32 0.0, %v1206
    %v1208 = vpop.f32.mrb[0].mxu0
    %v1209 = vpop.f32.mrb[0].mxu0
    %v1210 = vpop.f32.mrb[0].mxu0
    %1211 = vdwg.mxu0
    %v1212 = vadd.f32 %v1207, %v57
    %1214 = vrot.lane.b32.xlu0 %v1212, 64
    %v1215 = vpop.permute.xlu0 %1214
    %1217 = vst.msk [vmem:[%s4 + $0x2] sm:$0x1] %vm904, %v1215
    %1218 = vset.pattern.permute.xlu0 64
    %1219 = vperm.xlu0 %1218, %v1212
    %v1220 = vpop.permute.xlu0 %1219
    %v1222 = vmul.f32 %v1220, %v911
    %1224 = vrot.lane.b32.xlu0 %v1222, 32
    %v1225 = vpop.permute.xlu0 %1224
    %v1227 = vadd.f32 %v1212, %v1225
    %1228 = vset.pattern.permute.xlu0 65
    %1229 = vperm.xlu0 %1228, %v1212
    %v1230 = vpop.permute.xlu0 %1229
    %v1232 = vmul.f32 %v1230, %v932
    %1234 = vrot.lane.b32.xlu0 %v1232, 32
    %v1235 = vpop.permute.xlu0 %1234
    %v1237 = vadd.f32 %v1227, %v1235
    %v1238 = vlaneseq
    %v1239 = vshrl.u32 %v1238, 7
    %v1240 = vsub.s32 0, %v1239
    %v1241 = vrot.slane %v1207, %v1240
    %v1242 = vadd.f32 %v1241, %v630
    %v1243 = vtanh.pop %v1242
    %v1244 = vsel %vm155, %v1243, 0.0
    %1245 = vadd.xlane.f32.xlu0 %v1244
    %v1246 = vpop.xlane.xlu0 %1245
    %v1247 = vmul.f32 %v1246, 1.442695
    %v1248 = vpow.pop %v1247
    %v1249 = vrot.slane %v1248, 4
    %v1250 = vadd.f32 %v1248, %v1249
    %v1251 = vrot.slane %v1250, 2
    %v1252 = vadd.f32 %v1250, %v1251
    %v1253 = vrot.slane %v1252, 1
    %v1254 = vadd.f32 %v1252, %v1253
    %v1255 = vrcp.pop %v1254
    %v1256 = vmul.f32 %v1248, %v1255
    %v1257 = vmul.f32 %v1256, %v578
    %v1258 = vsel %vm155, %v1257, 0.0
    %v1259 = vrot.slane %v1258, 4
    %v1260 = vadd.f32 %v1258, %v1259
    %v1261 = vrot.slane %v1260, 2
    %v1262 = vadd.f32 %v1260, %v1261
    %v1263 = vrot.slane %v1262, 1
    %v1264 = vadd.f32 %v1262, %v1263
    %v1265 = vmul.f32 %v1256, %v645
    %vm1266 = vcmask 31768
    %1267 = vst.msk [vmem:[#allocation3] sm:$0xff] %vm1266, %v1265
    %v1268 = vpack.c.bf16 %v1264, %v1264
    %1270 = vrot.lane.b32.xlu0 %v1237, 96
    %v1271 = vpop.permute.xlu0 %1270
    %v1274 = vsel %vm155, %v1268, 0
    %1276 = vmatprep.subr.bf16.mxu0 0
    %1277 = vmatpush1.bf16.msra.mxu0 %v802
    %1278 = vmatprep.subr.bf16.mxu0 0
    %1279 = vmatpush1.bf16.msra.mxu0 %v804
    %1280 = vmatprep.subr.bf16.mxu0 0
    %1281 = vmatpush1.bf16.msra.mxu0 0
    %1282 = vmatprep.subr.bf16.mxu0 0
    %1283 = vmatpush1.bf16.msra.mxu0 0
    %1284 = vmatprep.subr.bf16.mxu0 0
    %1285 = vmatpush1.bf16.msra.mxu0 0
    %1286 = vmatprep.subr.bf16.mxu0 0
    %1287 = vmatpush1.bf16.msra.mxu0 0
    %1288 = vmatprep.subr.bf16.mxu0 0
    %1289 = vmatpush1.bf16.msra.mxu0 0
    %1290 = vmatprep.subr.bf16.mxu0 0
    %1291 = vmatpush1.bf16.msra.mxu0 0
    %1292 = vmatprep.subr.bf16.mxu0 0
    %1293 = vmatpush1.bf16.msra.mxu0 0
    %1294 = vmatprep.subr.bf16.mxu0 0
    %1295 = vmatpush1.bf16.msra.mxu0 0
    %1296 = vmatprep.subr.bf16.mxu0 0
    %1297 = vmatpush1.bf16.msra.mxu0 0
    %1298 = vmatprep.subr.bf16.mxu0 0
    %1299 = vmatpush1.bf16.msra.mxu0 0
    %1300 = vmatprep.subr.bf16.mxu0 0
    %1301 = vmatpush1.bf16.msra.mxu0 0
    %1302 = vmatprep.subr.bf16.mxu0 0
    %1303 = vmatpush1.bf16.msra.mxu0 0
    %1304 = vmatprep.subr.bf16.mxu0 0
    %1305 = vmatpush1.bf16.msra.mxu0 0
    %1306 = vmatprep.subr.bf16.mxu0 0
    %1307 = vmatpush1.bf16.msra.mxu0 0
    %1308 = vmatprep.mubr.bf16.mxu0 0
    %1309 = vmatmul.mubr.bf16.gmra.mrb[0].mxu0 %v1274
    %v1310 = vpop.f32.mrb[0].mxu0
    %v1311 = vadd.f32 %v1271, %v1310
    %v1312 = vpop.f32.mrb[0].mxu0
    %v1313 = vpop.f32.mrb[0].mxu0
    %v1314 = vpop.f32.mrb[0].mxu0
    %1315 = vdwg.mxu0
    %v1316 = vtanh.pop %v1311
    %v1317 = vpack.c.bf16 %v1316, %v1316
    %v1319 = vsel %vm155, %v1317, 0
    %1321 = vmatprep.subr.bf16.mxu0 0
    %1322 = vmatpush1.bf16.msra.mxu0 %v678
    %1323 = vmatprep.subr.bf16.mxu0 0
    %1324 = vmatpush1.bf16.msra.mxu0 %v679
    %1325 = vmatprep.subr.bf16.mxu0 0
    %1326 = vmatpush1.bf16.msra.mxu0 0
    %1327 = vmatprep.subr.bf16.mxu0 0
    %1328 = vmatpush1.bf16.msra.mxu0 0
    %1329 = vmatprep.subr.bf16.mxu0 0
    %1330 = vmatpush1.bf16.msra.mxu0 0
    %1331 = vmatprep.subr.bf16.mxu0 0
    %1332 = vmatpush1.bf16.msra.mxu0 0
    %1333 = vmatprep.subr.bf16.mxu0 0
    %1334 = vmatpush1.bf16.msra.mxu0 0
    %1335 = vmatprep.subr.bf16.mxu0 0
    %1336 = vmatpush1.bf16.msra.mxu0 0
    %1337 = vmatprep.subr.bf16.mxu0 0
    %1338 = vmatpush1.bf16.msra.mxu0 0
    %1339 = vmatprep.subr.bf16.mxu0 0
    %1340 = vmatpush1.bf16.msra.mxu0 0
    %1341 = vmatprep.subr.bf16.mxu0 0
    %1342 = vmatpush1.bf16.msra.mxu0 0
    %1343 = vmatprep.subr.bf16.mxu0 0
    %1344 = vmatpush1.bf16.msra.mxu0 0
    %1345 = vmatprep.subr.bf16.mxu0 0
    %1346 = vmatpush1.bf16.msra.mxu0 0
    %1347 = vmatprep.subr.bf16.mxu0 0
    %1348 = vmatpush1.bf16.msra.mxu0 0
    %1349 = vmatprep.subr.bf16.mxu0 0
    %1350 = vmatpush1.bf16.msra.mxu0 0
    %1351 = vmatprep.subr.bf16.mxu0 0
    %1352 = vmatpush1.bf16.msra.mxu0 0
    %1353 = vmatprep.mubr.bf16.mxu0 0
    %1354 = vmatmul.mubr.bf16.gmra.mrb[0].mxu0 %v1319
    %v1355 = vpop.f32.mrb[0].mxu0
    %v1356 = vadd.f32 0.0, %v1355
    %v1357 = vpop.f32.mrb[0].mxu0
    %v1358 = vpop.f32.mrb[0].mxu0
    %v1359 = vpop.f32.mrb[0].mxu0
    %1360 = vdwg.mxu0
    %v1361 = vadd.f32 %v1356, %v57
    %1363 = vrot.lane.b32.xlu0 %v1361, 64
    %v1364 = vpop.permute.xlu0 %1363
    %1366 = vst.msk [vmem:[%s4 + $0x3] sm:$0x1] %vm904, %v1364
    %1367 = vset.pattern.permute.xlu0 64
    %1368 = vperm.xlu0 %1367, %v1361
    %v1369 = vpop.permute.xlu0 %1368
    %v1371 = vmul.f32 %v1369, %v911
    %1373 = vrot.lane.b32.xlu0 %v1371, 32
    %v1374 = vpop.permute.xlu0 %1373
    %v1376 = vadd.f32 %v1361, %v1374
    %1377 = vset.pattern.permute.xlu0 65
    %1378 = vperm.xlu0 %1377, %v1361
    %v1379 = vpop.permute.xlu0 %1378
    %v1381 = vmul.f32 %v1379, %v932
    %1383 = vrot.lane.b32.xlu0 %v1381, 32
    %v1384 = vpop.permute.xlu0 %1383
    %v1386 = vadd.f32 %v1376, %v1384
    %v1387 = vlaneseq
    %v1388 = vshrl.u32 %v1387, 7
    %v1389 = vsub.s32 0, %v1388
    %v1390 = vrot.slane %v1356, %v1389
    %v1391 = vadd.f32 %v1390, %v630
    %v1392 = vtanh.pop %v1391
    %v1393 = vsel %vm155, %v1392, 0.0
    %1394 = vadd.xlane.f32.xlu0 %v1393
    %v1395 = vpop.xlane.xlu0 %1394
    %v1396 = vmul.f32 %v1395, 1.442695
    %v1397 = vpow.pop %v1396
    %v1398 = vrot.slane %v1397, 4
    %v1399 = vadd.f32 %v1397, %v1398
    %v1400 = vrot.slane %v1399, 2
    %v1401 = vadd.f32 %v1399, %v1400
    %v1402 = vrot.slane %v1401, 1
    %v1403 = vadd.f32 %v1401, %v1402
    %v1404 = vrcp.pop %v1403
    %v1405 = vmul.f32 %v1397, %v1404
    %v1406 = vmul.f32 %v1405, %v578
    %v1407 = vsel %vm155, %v1406, 0.0
    %v1408 = vrot.slane %v1407, 4
    %v1409 = vadd.f32 %v1407, %v1408
    %v1410 = vrot.slane %v1409, 2
    %v1411 = vadd.f32 %v1409, %v1410
    %v1412 = vrot.slane %v1411, 1
    %v1413 = vadd.f32 %v1411, %v1412
    %v1414 = vmul.f32 %v1405, %v645
    %vm1415 = vcmask 39968
    %1416 = vst.msk [vmem:[#allocation3] sm:$0xff] %vm1415, %v1414
    %v1417 = vpack.c.bf16 %v1413, %v1413
    %1419 = vrot.lane.b32.xlu0 %v1386, 96
    %v1420 = vpop.permute.xlu0 %1419
    %v1423 = vsel %vm155, %v1417, 0
    %1425 = vmatprep.subr.bf16.mxu0 0
    %1426 = vmatpush1.bf16.msra.mxu0 %v802
    %1427 = vmatprep.subr.bf16.mxu0 0
    %1428 = vmatpush1.bf16.msra.mxu0 %v804
    %1429 = vmatprep.subr.bf16.mxu0 0
    %1430 = vmatpush1.bf16.msra.mxu0 0
    %1431 = vmatprep.subr.bf16.mxu0 0
    %1432 = vmatpush1.bf16.msra.mxu0 0
    %1433 = vmatprep.subr.bf16.mxu0 0
    %1434 = vmatpush1.bf16.msra.mxu0 0
    %1435 = vmatprep.subr.bf16.mxu0 0
    %1436 = vmatpush1.bf16.msra.mxu0 0
    %1437 = vmatprep.subr.bf16.mxu0 0
    %1438 = vmatpush1.bf16.msra.mxu0 0
    %1439 = vmatprep.subr.bf16.mxu0 0
    %1440 = vmatpush1.bf16.msra.mxu0 0
    %1441 = vmatprep.subr.bf16.mxu0 0
    %1442 = vmatpush1.bf16.msra.mxu0 0
    %1443 = vmatprep.subr.bf16.mxu0 0
    %1444 = vmatpush1.bf16.msra.mxu0 0
    %1445 = vmatprep.subr.bf16.mxu0 0
    %1446 = vmatpush1.bf16.msra.mxu0 0
    %1447 = vmatprep.subr.bf16.mxu0 0
    %1448 = vmatpush1.bf16.msra.mxu0 0
    %1449 = vmatprep.subr.bf16.mxu0 0
    %1450 = vmatpush1.bf16.msra.mxu0 0
    %1451 = vmatprep.subr.bf16.mxu0 0
    %1452 = vmatpush1.bf16.msra.mxu0 0
    %1453 = vmatprep.subr.bf16.mxu0 0
    %1454 = vmatpush1.bf16.msra.mxu0 0
    %1455 = vmatprep.subr.bf16.mxu0 0
    %1456 = vmatpush1.bf16.msra.mxu0 0
    %1457 = vmatprep.mubr.bf16.mxu0 0
    %1458 = vmatmul.mubr.bf16.gmra.mrb[0].mxu0 %v1423
    %v1459 = vpop.f32.mrb[0].mxu0
    %v1460 = vadd.f32 %v1420, %v1459
    %v1461 = vpop.f32.mrb[0].mxu0
    %v1462 = vpop.f32.mrb[0].mxu0
    %v1463 = vpop.f32.mrb[0].mxu0
    %1464 = vdwg.mxu0
    %v1465 = vtanh.pop %v1460
    %v1466 = vpack.c.bf16 %v1465, %v1465
    %v1468 = vsel %vm155, %v1466, 0
    %1470 = vmatprep.subr.bf16.mxu0 0
    %1471 = vmatpush1.bf16.msra.mxu0 %v678
    %1472 = vmatprep.subr.bf16.mxu0 0
    %1473 = vmatpush1.bf16.msra.mxu0 %v679
    %1474 = vmatprep.subr.bf16.mxu0 0
    %1475 = vmatpush1.bf16.msra.mxu0 0
    %1476 = vmatprep.subr.bf16.mxu0 0
    %1477 = vmatpush1.bf16.msra.mxu0 0
    %1478 = vmatprep.subr.bf16.mxu0 0
    %1479 = vmatpush1.bf16.msra.mxu0 0
    %1480 = vmatprep.subr.bf16.mxu0 0
    %1481 = vmatpush1.bf16.msra.mxu0 0
    %1482 = vmatprep.subr.bf16.mxu0 0
    %1483 = vmatpush1.bf16.msra.mxu0 0
    %1484 = vmatprep.subr.bf16.mxu0 0
    %1485 = vmatpush1.bf16.msra.mxu0 0
    %1486 = vmatprep.subr.bf16.mxu0 0
    %1487 = vmatpush1.bf16.msra.mxu0 0
    %1488 = vmatprep.subr.bf16.mxu0 0
    %1489 = vmatpush1.bf16.msra.mxu0 0
    %1490 = vmatprep.subr.bf16.mxu0 0
    %1491 = vmatpush1.bf16.msra.mxu0 0
    %1492 = vmatprep.subr.bf16.mxu0 0
    %1493 = vmatpush1.bf16.msra.mxu0 0
    %1494 = vmatprep.subr.bf16.mxu0 0
    %1495 = vmatpush1.bf16.msra.mxu0 0
    %1496 = vmatprep.subr.bf16.mxu0 0
    %1497 = vmatpush1.bf16.msra.mxu0 0
    %1498 = vmatprep.subr.bf16.mxu0 0
    %1499 = vmatpush1.bf16.msra.mxu0 0
    %1500 = vmatprep.subr.bf16.mxu0 0
    %1501 = vmatpush1.bf16.msra.mxu0 0
    %1502 = vmatprep.mubr.bf16.mxu0 0
    %1503 = vmatmul.mubr.bf16.gmra.mrb[0].mxu0 %v1468
    %v1504 = vpop.f32.mrb[0].mxu0
    %v1505 = vadd.f32 0.0, %v1504
    %v1506 = vpop.f32.mrb[0].mxu0
    %v1507 = vpop.f32.mrb[0].mxu0
    %v1508 = vpop.f32.mrb[0].mxu0
    %1509 = vdwg.mxu0
    %v1510 = vadd.f32 %v1505, %v57
    %1512 = vrot.lane.b32.xlu0 %v1510, 64
    %v1513 = vpop.permute.xlu0 %1512
    %1515 = vst.msk [vmem:[%s4 + $0x4] sm:$0x1] %vm904, %v1513
    %1516 = vset.pattern.permute.xlu0 64
    %1517 = vperm.xlu0 %1516, %v1510
    %v1518 = vpop.permute.xlu0 %1517
    %v1520 = vmul.f32 %v1518, %v911
    %1522 = vrot.lane.b32.xlu0 %v1520, 32
    %v1523 = vpop.permute.xlu0 %1522
    %v1525 = vadd.f32 %v1510, %v1523
    %1526 = vset.pattern.permute.xlu0 65
    %1527 = vperm.xlu0 %1526, %v1510
    %v1528 = vpop.permute.xlu0 %1527
    %v1530 = vmul.f32 %v1528, %v932
    %1532 = vrot.lane.b32.xlu0 %v1530, 32
    %v1533 = vpop.permute.xlu0 %1532
    %v1535 = vadd.f32 %v1525, %v1533
    %v1536 = vlaneseq
    %v1537 = vshrl.u32 %v1536, 7
    %v1538 = vsub.s32 0, %v1537
    %v1539 = vrot.slane %v1505, %v1538
    %v1540 = vadd.f32 %v1539, %v630
    %v1541 = vtanh.pop %v1540
    %v1542 = vsel %vm155, %v1541, 0.0
    %1543 = vadd.xlane.f32.xlu0 %v1542
    %v1544 = vpop.xlane.xlu0 %1543
    %v1545 = vmul.f32 %v1544, 1.442695
    %v1546 = vpow.pop %v1545
    %v1547 = vrot.slane %v1546, 4
    %v1548 = vadd.f32 %v1546, %v1547
    %v1549 = vrot.slane %v1548, 2
    %v1550 = vadd.f32 %v1548, %v1549
    %v1551 = vrot.slane %v1550, 1
    %v1552 = vadd.f32 %v1550, %v1551
    %v1553 = vrcp.pop %v1552
    %v1554 = vmul.f32 %v1546, %v1553
    %v1555 = vmul.f32 %v1554, %v578
    %v1556 = vsel %vm155, %v1555, 0.0
    %v1557 = vrot.slane %v1556, 4
    %v1558 = vadd.f32 %v1556, %v1557
    %v1559 = vrot.slane %v1558, 2
    %v1560 = vadd.f32 %v1558, %v1559
    %v1561 = vrot.slane %v1560, 1
    %v1562 = vadd.f32 %v1560, %v1561
    %v1563 = vmul.f32 %v1554, %v645
    %vm1564 = vcmask 48168
    %1565 = vst.msk [vmem:[#allocation3] sm:$0xff] %vm1564, %v1563
    %v1566 = vpack.c.bf16 %v1562, %v1562
    %1568 = vrot.lane.b32.xlu0 %v1535, 96
    %v1569 = vpop.permute.xlu0 %1568
    %v1572 = vsel %vm155, %v1566, 0
    %1574 = vmatprep.subr.bf16.mxu0 0
    %1575 = vmatpush1.bf16.msra.mxu0 %v802
    %1576 = vmatprep.subr.bf16.mxu0 0
    %1577 = vmatpush1.bf16.msra.mxu0 %v804
    %1578 = vmatprep.subr.bf16.mxu0 0
    %1579 = vmatpush1.bf16.msra.mxu0 0
    %1580 = vmatprep.subr.bf16.mxu0 0
    %1581 = vmatpush1.bf16.msra.mxu0 0
    %1582 = vmatprep.subr.bf16.mxu0 0
    %1583 = vmatpush1.bf16.msra.mxu0 0
    %1584 = vmatprep.subr.bf16.mxu0 0
    %1585 = vmatpush1.bf16.msra.mxu0 0
    %1586 = vmatprep.subr.bf16.mxu0 0
    %1587 = vmatpush1.bf16.msra.mxu0 0
    %1588 = vmatprep.subr.bf16.mxu0 0
    %1589 = vmatpush1.bf16.msra.mxu0 0
    %1590 = vmatprep.subr.bf16.mxu0 0
    %1591 = vmatpush1.bf16.msra.mxu0 0
    %1592 = vmatprep.subr.bf16.mxu0 0
    %1593 = vmatpush1.bf16.msra.mxu0 0
    %1594 = vmatprep.subr.bf16.mxu0 0
    %1595 = vmatpush1.bf16.msra.mxu0 0
    %1596 = vmatprep.subr.bf16.mxu0 0
    %1597 = vmatpush1.bf16.msra.mxu0 0
    %1598 = vmatprep.subr.bf16.mxu0 0
    %1599 = vmatpush1.bf16.msra.mxu0 0
    %1600 = vmatprep.subr.bf16.mxu0 0
    %1601 = vmatpush1.bf16.msra.mxu0 0
    %1602 = vmatprep.subr.bf16.mxu0 0
    %1603 = vmatpush1.bf16.msra.mxu0 0
    %1604 = vmatprep.subr.bf16.mxu0 0
    %1605 = vmatpush1.bf16.msra.mxu0 0
    %1606 = vmatprep.mubr.bf16.mxu0 0
    %1607 = vmatmul.mubr.bf16.gmra.mrb[0].mxu0 %v1572
    %v1608 = vpop.f32.mrb[0].mxu0
    %v1609 = vadd.f32 %v1569, %v1608
    %v1610 = vpop.f32.mrb[0].mxu0
    %v1611 = vpop.f32.mrb[0].mxu0
    %v1612 = vpop.f32.mrb[0].mxu0
    %1613 = vdwg.mxu0
    %v1614 = vtanh.pop %v1609
    %v1615 = vpack.c.bf16 %v1614, %v1614
    %v1617 = vsel %vm155, %v1615, 0
    %1619 = vmatprep.subr.bf16.mxu0 0
    %1620 = vmatpush1.bf16.msra.mxu0 %v678
    %1621 = vmatprep.subr.bf16.mxu0 0
    %1622 = vmatpush1.bf16.msra.mxu0 %v679
    %1623 = vmatprep.subr.bf16.mxu0 0
    %1624 = vmatpush1.bf16.msra.mxu0 0
    %1625 = vmatprep.subr.bf16.mxu0 0
    %1626 = vmatpush1.bf16.msra.mxu0 0
    %1627 = vmatprep.subr.bf16.mxu0 0
    %1628 = vmatpush1.bf16.msra.mxu0 0
    %1629 = vmatprep.subr.bf16.mxu0 0
    %1630 = vmatpush1.bf16.msra.mxu0 0
    %1631 = vmatprep.subr.bf16.mxu0 0
    %1632 = vmatpush1.bf16.msra.mxu0 0
    %1633 = vmatprep.subr.bf16.mxu0 0
    %1634 = vmatpush1.bf16.msra.mxu0 0
    %1635 = vmatprep.subr.bf16.mxu0 0
    %1636 = vmatpush1.bf16.msra.mxu0 0
    %1637 = vmatprep.subr.bf16.mxu0 0
    %1638 = vmatpush1.bf16.msra.mxu0 0
    %1639 = vmatprep.subr.bf16.mxu0 0
    %1640 = vmatpush1.bf16.msra.mxu0 0
    %1641 = vmatprep.subr.bf16.mxu0 0
    %1642 = vmatpush1.bf16.msra.mxu0 0
    %1643 = vmatprep.subr.bf16.mxu0 0
    %1644 = vmatpush1.bf16.msra.mxu0 0
    %1645 = vmatprep.subr.bf16.mxu0 0
    %1646 = vmatpush1.bf16.msra.mxu0 0
    %1647 = vmatprep.subr.bf16.mxu0 0
    %1648 = vmatpush1.bf16.msra.mxu0 0
    %1649 = vmatprep.subr.bf16.mxu0 0
    %1650 = vmatpush1.bf16.msra.mxu0 0
    %1651 = vmatprep.mubr.bf16.mxu0 0
    %1652 = vmatmul.mubr.bf16.gmra.mrb[0].mxu0 %v1617
    %v1653 = vpop.f32.mrb[0].mxu0
    %v1654 = vadd.f32 0.0, %v1653
    %v1655 = vpop.f32.mrb[0].mxu0
    %v1656 = vpop.f32.mrb[0].mxu0
    %v1657 = vpop.f32.mrb[0].mxu0
    %1658 = vdwg.mxu0
    %v1659 = vadd.f32 %v1654, %v57
    %1661 = vrot.lane.b32.xlu0 %v1659, 64
    %v1662 = vpop.permute.xlu0 %1661
    %1664 = vst.msk [vmem:[%s4 + $0x5] sm:$0x1] %vm904, %v1662
    %1665 = vset.pattern.permute.xlu0 64
    %1666 = vperm.xlu0 %1665, %v1659
    %v1667 = vpop.permute.xlu0 %1666
    %v1669 = vmul.f32 %v1667, %v911
    %1671 = vrot.lane.b32.xlu0 %v1669, 32
    %v1672 = vpop.permute.xlu0 %1671
    %v1674 = vadd.f32 %v1659, %v1672
    %1675 = vset.pattern.permute.xlu0 65
    %1676 = vperm.xlu0 %1675, %v1659
    %v1677 = vpop.permute.xlu0 %1676
    %v1679 = vmul.f32 %v1677, %v932
    %1681 = vrot.lane.b32.xlu0 %v1679, 32
    %v1682 = vpop.permute.xlu0 %1681
    %v1684 = vadd.f32 %v1674, %v1682
    %v1685 = vlaneseq
    %v1686 = vshrl.u32 %v1685, 7
    %v1687 = vsub.s32 0, %v1686
    %v1688 = vrot.slane %v1654, %v1687
    %v1689 = vadd.f32 %v1688, %v630
    %v1690 = vtanh.pop %v1689
    %v1691 = vsel %vm155, %v1690, 0.0
    %1692 = vadd.xlane.f32.xlu0 %v1691
    %v1693 = vpop.xlane.xlu0 %1692
    %v1694 = vmul.f32 %v1693, 1.442695
    %v1695 = vpow.pop %v1694
    %v1696 = vrot.slane %v1695, 4
    %v1697 = vadd.f32 %v1695, %v1696
    %v1698 = vrot.slane %v1697, 2
    %v1699 = vadd.f32 %v1697, %v1698
    %v1700 = vrot.slane %v1699, 1
    %v1701 = vadd.f32 %v1699, %v1700
    %v1702 = vrcp.pop %v1701
    %v1703 = vmul.f32 %v1695, %v1702
    %v1704 = vmul.f32 %v1703, %v578
    %v1705 = vsel %vm155, %v1704, 0.0
    %v1706 = vrot.slane %v1705, 4
    %v1707 = vadd.f32 %v1705, %v1706
    %v1708 = vrot.slane %v1707, 2
    %v1709 = vadd.f32 %v1707, %v1708
    %v1710 = vrot.slane %v1709, 1
    %v1711 = vadd.f32 %v1709, %v1710
    %v1712 = vmul.f32 %v1703, %v645
    %vm1713 = vcmask 56368
    %1714 = vst.msk [vmem:[#allocation3] sm:$0xff] %vm1713, %v1712
    %v1715 = vpack.c.bf16 %v1711, %v1711
    %1717 = vrot.lane.b32.xlu0 %v1684, 96
    %v1718 = vpop.permute.xlu0 %1717
    %v1721 = vsel %vm155, %v1715, 0
    %1723 = vmatprep.subr.bf16.mxu0 0
    %1724 = vmatpush1.bf16.msra.mxu0 %v802
    %1725 = vmatprep.subr.bf16.mxu0 0
    %1726 = vmatpush1.bf16.msra.mxu0 %v804
    %1727 = vmatprep.subr.bf16.mxu0 0
    %1728 = vmatpush1.bf16.msra.mxu0 0
    %1729 = vmatprep.subr.bf16.mxu0 0
    %1730 = vmatpush1.bf16.msra.mxu0 0
    %1731 = vmatprep.subr.bf16.mxu0 0
    %1732 = vmatpush1.bf16.msra.mxu0 0
    %1733 = vmatprep.subr.bf16.mxu0 0
    %1734 = vmatpush1.bf16.msra.mxu0 0
    %1735 = vmatprep.subr.bf16.mxu0 0
    %1736 = vmatpush1.bf16.msra.mxu0 0
    %1737 = vmatprep.subr.bf16.mxu0 0
    %1738 = vmatpush1.bf16.msra.mxu0 0
    %1739 = vmatprep.subr.bf16.mxu0 0
    %1740 = vmatpush1.bf16.msra.mxu0 0
    %1741 = vmatprep.subr.bf16.mxu0 0
    %1742 = vmatpush1.bf16.msra.mxu0 0
    %1743 = vmatprep.subr.bf16.mxu0 0
    %1744 = vmatpush1.bf16.msra.mxu0 0
    %1745 = vmatprep.subr.bf16.mxu0 0
    %1746 = vmatpush1.bf16.msra.mxu0 0
    %1747 = vmatprep.subr.bf16.mxu0 0
    %1748 = vmatpush1.bf16.msra.mxu0 0
    %1749 = vmatprep.subr.bf16.mxu0 0
    %1750 = vmatpush1.bf16.msra.mxu0 0
    %1751 = vmatprep.subr.bf16.mxu0 0
    %1752 = vmatpush1.bf16.msra.mxu0 0
    %1753 = vmatprep.subr.bf16.mxu0 0
    %1754 = vmatpush1.bf16.msra.mxu0 0
    %1755 = vmatprep.mubr.bf16.mxu0 0
    %1756 = vmatmul.mubr.bf16.gmra.mrb[0].mxu0 %v1721
    %v1757 = vpop.f32.mrb[0].mxu0
    %v1758 = vadd.f32 %v1718, %v1757
    %v1759 = vpop.f32.mrb[0].mxu0
    %v1760 = vpop.f32.mrb[0].mxu0
    %v1761 = vpop.f32.mrb[0].mxu0
    %1762 = vdwg.mxu0
    %v1763 = vtanh.pop %v1758
    %v1764 = vpack.c.bf16 %v1763, %v1763
    %v1766 = vsel %vm155, %v1764, 0
    %1768 = vmatprep.subr.bf16.mxu0 0
    %1769 = vmatpush1.bf16.msra.mxu0 %v678
    %1770 = vmatprep.subr.bf16.mxu0 0
    %1771 = vmatpush1.bf16.msra.mxu0 %v679
    %1772 = vmatprep.subr.bf16.mxu0 0
    %1773 = vmatpush1.bf16.msra.mxu0 0
    %1774 = vmatprep.subr.bf16.mxu0 0
    %1775 = vmatpush1.bf16.msra.mxu0 0
    %1776 = vmatprep.subr.bf16.mxu0 0
    %1777 = vmatpush1.bf16.msra.mxu0 0
    %1778 = vmatprep.subr.bf16.mxu0 0
    %1779 = vmatpush1.bf16.msra.mxu0 0
    %1780 = vmatprep.subr.bf16.mxu0 0
    %1781 = vmatpush1.bf16.msra.mxu0 0
    %1782 = vmatprep.subr.bf16.mxu0 0
    %1783 = vmatpush1.bf16.msra.mxu0 0
    %1784 = vmatprep.subr.bf16.mxu0 0
    %1785 = vmatpush1.bf16.msra.mxu0 0
    %1786 = vmatprep.subr.bf16.mxu0 0
    %1787 = vmatpush1.bf16.msra.mxu0 0
    %1788 = vmatprep.subr.bf16.mxu0 0
    %1789 = vmatpush1.bf16.msra.mxu0 0
    %1790 = vmatprep.subr.bf16.mxu0 0
    %1791 = vmatpush1.bf16.msra.mxu0 0
    %1792 = vmatprep.subr.bf16.mxu0 0
    %1793 = vmatpush1.bf16.msra.mxu0 0
    %1794 = vmatprep.subr.bf16.mxu0 0
    %1795 = vmatpush1.bf16.msra.mxu0 0
    %1796 = vmatprep.subr.bf16.mxu0 0
    %1797 = vmatpush1.bf16.msra.mxu0 0
    %1798 = vmatprep.subr.bf16.mxu0 0
    %1799 = vmatpush1.bf16.msra.mxu0 0
    %1800 = vmatprep.mubr.bf16.mxu0 0
    %1801 = vmatmul.mubr.bf16.gmra.mrb[0].mxu0 %v1766
    %v1802 = vpop.f32.mrb[0].mxu0
    %v1803 = vadd.f32 0.0, %v1802
    %v1804 = vpop.f32.mrb[0].mxu0
    %v1805 = vpop.f32.mrb[0].mxu0
    %v1806 = vpop.f32.mrb[0].mxu0
    %1807 = vdwg.mxu0
    %v1808 = vadd.f32 %v1803, %v57
    %1810 = vrot.lane.b32.xlu0 %v1808, 64
    %v1811 = vpop.permute.xlu0 %1810
    %1813 = vst.msk [vmem:[%s4 + $0x6] sm:$0x1] %vm904, %v1811
    %1814 = vset.pattern.permute.xlu0 64
    %1815 = vperm.xlu0 %1814, %v1808
    %v1816 = vpop.permute.xlu0 %1815
    %v1818 = vmul.f32 %v1816, %v911
    %1820 = vrot.lane.b32.xlu0 %v1818, 32
    %v1821 = vpop.permute.xlu0 %1820
    %v1823 = vadd.f32 %v1808, %v1821
    %1824 = vset.pattern.permute.xlu0 65
    %1825 = vperm.xlu0 %1824, %v1808
    %v1826 = vpop.permute.xlu0 %1825
    %v1828 = vmul.f32 %v1826, %v932
    %1830 = vrot.lane.b32.xlu0 %v1828, 32
    %v1831 = vpop.permute.xlu0 %1830
    %v1833 = vadd.f32 %v1823, %v1831
    %v1834 = vlaneseq
    %v1835 = vshrl.u32 %v1834, 7
    %v1836 = vsub.s32 0, %v1835
    %v1837 = vrot.slane %v1803, %v1836
    %v1838 = vadd.f32 %v1837, %v630
    %v1839 = vtanh.pop %v1838
    %v1840 = vsel %vm155, %v1839, 0.0
    %1841 = vadd.xlane.f32.xlu0 %v1840
    %v1842 = vpop.xlane.xlu0 %1841
    %v1843 = vmul.f32 %v1842, 1.442695
    %v1844 = vpow.pop %v1843
    %v1845 = vrot.slane %v1844, 4
    %v1846 = vadd.f32 %v1844, %v1845
    %v1847 = vrot.slane %v1846, 2
    %v1848 = vadd.f32 %v1846, %v1847
    %v1849 = vrot.slane %v1848, 1
    %v1850 = vadd.f32 %v1848, %v1849
    %v1851 = vrcp.pop %v1850
    %v1852 = vmul.f32 %v1844, %v1851
    %v1853 = vmul.f32 %v1852, %v578
    %v1854 = vsel %vm155, %v1853, 0.0
    %v1855 = vrot.slane %v1854, 4
    %v1856 = vadd.f32 %v1854, %v1855
    %v1857 = vrot.slane %v1856, 2
    %v1858 = vadd.f32 %v1856, %v1857
    %v1859 = vrot.slane %v1858, 1
    %v1860 = vadd.f32 %v1858, %v1859
    %v1861 = vmul.f32 %v1852, %v645
    %vm1862 = vcmask 64568
    %1863 = vst.msk [vmem:[#allocation3] sm:$0xff] %vm1862, %v1861
    %v1864 = vpack.c.bf16 %v1860, %v1860
    %1866 = vrot.lane.b32.xlu0 %v1833, 96
    %v1867 = vpop.permute.xlu0 %1866
    %v1870 = vsel %vm155, %v1864, 0
    %1872 = vmatprep.subr.bf16.mxu0 0
    %1873 = vmatpush1.bf16.msra.mxu0 %v802
    %1874 = vmatprep.subr.bf16.mxu0 0
    %1875 = vmatpush1.bf16.msra.mxu0 %v804
    %1876 = vmatprep.subr.bf16.mxu0 0
    %1877 = vmatpush1.bf16.msra.mxu0 0
    %1878 = vmatprep.subr.bf16.mxu0 0
    %1879 = vmatpush1.bf16.msra.mxu0 0
    %1880 = vmatprep.subr.bf16.mxu0 0
    %1881 = vmatpush1.bf16.msra.mxu0 0
    %1882 = vmatprep.subr.bf16.mxu0 0
    %1883 = vmatpush1.bf16.msra.mxu0 0
    %1884 = vmatprep.subr.bf16.mxu0 0
    %1885 = vmatpush1.bf16.msra.mxu0 0
    %1886 = vmatprep.subr.bf16.mxu0 0
    %1887 = vmatpush1.bf16.msra.mxu0 0
    %1888 = vmatprep.subr.bf16.mxu0 0
    %1889 = vmatpush1.bf16.msra.mxu0 0
    %1890 = vmatprep.subr.bf16.mxu0 0
    %1891 = vmatpush1.bf16.msra.mxu0 0
    %1892 = vmatprep.subr.bf16.mxu0 0
    %1893 = vmatpush1.bf16.msra.mxu0 0
    %1894 = vmatprep.subr.bf16.mxu0 0
    %1895 = vmatpush1.bf16.msra.mxu0 0
    %1896 = vmatprep.subr.bf16.mxu0 0
    %1897 = vmatpush1.bf16.msra.mxu0 0
    %1898 = vmatprep.subr.bf16.mxu0 0
    %1899 = vmatpush1.bf16.msra.mxu0 0
    %1900 = vmatprep.subr.bf16.mxu0 0
    %1901 = vmatpush1.bf16.msra.mxu0 0
    %1902 = vmatprep.subr.bf16.mxu0 0
    %1903 = vmatpush1.bf16.msra.mxu0 0
    %1904 = vmatprep.mubr.bf16.mxu0 0
    %1905 = vmatmul.mubr.bf16.gmra.mrb[0].mxu0 %v1870
    %v1906 = vpop.f32.mrb[0].mxu0
    %v1907 = vadd.f32 %v1867, %v1906
    %v1908 = vpop.f32.mrb[0].mxu0
    %v1909 = vpop.f32.mrb[0].mxu0
    %v1910 = vpop.f32.mrb[0].mxu0
    %1911 = vdwg.mxu0
    %v1912 = vtanh.pop %v1907
    %v1913 = vpack.c.bf16 %v1912, %v1912
    %v1915 = vsel %vm155, %v1913, 0
    %1917 = vmatprep.subr.bf16.mxu0 0
    %1918 = vmatpush1.bf16.msra.mxu0 %v678
    %1919 = vmatprep.subr.bf16.mxu0 0
    %1920 = vmatpush1.bf16.msra.mxu0 %v679
    %1921 = vmatprep.subr.bf16.mxu0 0
    %1922 = vmatpush1.bf16.msra.mxu0 0
    %1923 = vmatprep.subr.bf16.mxu0 0
    %1924 = vmatpush1.bf16.msra.mxu0 0
    %1925 = vmatprep.subr.bf16.mxu0 0
    %1926 = vmatpush1.bf16.msra.mxu0 0
    %1927 = vmatprep.subr.bf16.mxu0 0
    %1928 = vmatpush1.bf16.msra.mxu0 0
    %1929 = vmatprep.subr.bf16.mxu0 0
    %1930 = vmatpush1.bf16.msra.mxu0 0
    %1931 = vmatprep.subr.bf16.mxu0 0
    %1932 = vmatpush1.bf16.msra.mxu0 0
    %1933 = vmatprep.subr.bf16.mxu0 0
    %1934 = vmatpush1.bf16.msra.mxu0 0
    %1935 = vmatprep.subr.bf16.mxu0 0
    %1936 = vmatpush1.bf16.msra.mxu0 0
    %1937 = vmatprep.subr.bf16.mxu0 0
    %1938 = vmatpush1.bf16.msra.mxu0 0
    %1939 = vmatprep.subr.bf16.mxu0 0
    %1940 = vmatpush1.bf16.msra.mxu0 0
    %1941 = vmatprep.subr.bf16.mxu0 0
    %1942 = vmatpush1.bf16.msra.mxu0 0
    %1943 = vmatprep.subr.bf16.mxu0 0
    %1944 = vmatpush1.bf16.msra.mxu0 0
    %1945 = vmatprep.subr.bf16.mxu0 0
    %1946 = vmatpush1.bf16.msra.mxu0 0
    %1947 = vmatprep.subr.bf16.mxu0 0
    %1948 = vmatpush1.bf16.msra.mxu0 0
    %1949 = vmatprep.mubr.bf16.mxu0 0
    %1950 = vmatmul.mubr.bf16.gmra.mrb[0].mxu0 %v1915
    %v1951 = vpop.f32.mrb[0].mxu0
    %v1952 = vadd.f32 0.0, %v1951
    %v1953 = vpop.f32.mrb[0].mxu0
    %v1954 = vpop.f32.mrb[0].mxu0
    %v1955 = vpop.f32.mrb[0].mxu0
    %1956 = vdwg.mxu0
    %v1957 = vadd.f32 %v1952, %v57
    %1959 = vrot.lane.b32.xlu0 %v1957, 64
    %v1960 = vpop.permute.xlu0 %1959
    %1962 = vst.msk [vmem:[%s4 + $0x7] sm:$0x1] %vm904, %v1960
    %v1963 = vld [vmem:[#allocation3] sm:$0xff]
    %1965 = vset.pattern.permute.xlu0 0
    %1966 = vperm.xlu0 %1965, %v1963
    %v1967 = vpop.permute.xlu0 %1966
    %v1969 = vsel %vm648, %v1967, 0.0
    %vm1970 = vcmask 64512
    %v1971 = vsel %vm1970, %v1969, 0.0
    %v1972 = vrot.slane %v1971, 4
    %v1973 = vadd.f32 %v1971, %v1972
    %v1974 = vrot.slane %v1973, 2
    %v1975 = vadd.f32 %v1973, %v1974
    %v1976 = vrot.slane %v1975, 1
    %v1977 = vadd.f32 %v1975, %v1976
    %vm1978 = vcmask 57344
    %1979 = vst.msk [vmem:[#allocation9] sm:$0x1] %vm1978, %v1977
    %1980 = vset.pattern.permute.xlu0 1
    %1981 = vperm.xlu0 %1980, %v1963
    %v1982 = vpop.permute.xlu0 %1981
    %v1984 = vsel %vm648, %v1982, 0.0
    %v1985 = vsel %vm1970, %v1984, 0.0
    %v1986 = vrot.slane %v1985, 4
    %v1987 = vadd.f32 %v1985, %v1986
    %v1988 = vrot.slane %v1987, 2
    %v1989 = vadd.f32 %v1987, %v1988
    %v1990 = vrot.slane %v1989, 1
    %v1991 = vadd.f32 %v1989, %v1990
    %1992 = vst.msk [vmem:[#allocation9 + $0x1] sm:$0x1] %vm1978, %v1991
    %1993 = vset.pattern.permute.xlu0 2
    %1994 = vperm.xlu0 %1993, %v1963
    %v1995 = vpop.permute.xlu0 %1994
    %v1997 = vsel %vm648, %v1995, 0.0
    %v1998 = vsel %vm1970, %v1997, 0.0
    %v1999 = vrot.slane %v1998, 4
    %v2000 = vadd.f32 %v1998, %v1999
    %v2001 = vrot.slane %v2000, 2
    %v2002 = vadd.f32 %v2000, %v2001
    %v2003 = vrot.slane %v2002, 1
    %v2004 = vadd.f32 %v2002, %v2003
    %2005 = vst.msk [vmem:[#allocation9 + $0x2] sm:$0x1] %vm1978, %v2004
    %2006 = vset.pattern.permute.xlu0 3
    %2007 = vperm.xlu0 %2006, %v1963
    %v2008 = vpop.permute.xlu0 %2007
    %v2010 = vsel %vm648, %v2008, 0.0
    %v2011 = vsel %vm1970, %v2010, 0.0
    %v2012 = vrot.slane %v2011, 4
    %v2013 = vadd.f32 %v2011, %v2012
    %v2014 = vrot.slane %v2013, 2
    %v2015 = vadd.f32 %v2013, %v2014
    %v2016 = vrot.slane %v2015, 1
    %v2017 = vadd.f32 %v2015, %v2016
    %2018 = vst.msk [vmem:[#allocation9 + $0x3] sm:$0x1] %vm1978, %v2017
    %2019 = vset.pattern.permute.xlu0 4
    %2020 = vperm.xlu0 %2019, %v1963
    %v2021 = vpop.permute.xlu0 %2020
    %v2023 = vsel %vm648, %v2021, 0.0
    %v2024 = vsel %vm1970, %v2023, 0.0
    %v2025 = vrot.slane %v2024, 4
    %v2026 = vadd.f32 %v2024, %v2025
    %v2027 = vrot.slane %v2026, 2
    %v2028 = vadd.f32 %v2026, %v2027
    %v2029 = vrot.slane %v2028, 1
    %v2030 = vadd.f32 %v2028, %v2029
    %2031 = vst.msk [vmem:[#allocation9 + $0x4] sm:$0x1] %vm1978, %v2030
    %2032 = vset.pattern.permute.xlu0 5
    %2033 = vperm.xlu0 %2032, %v1963
    %v2034 = vpop.permute.xlu0 %2033
    %v2036 = vsel %vm648, %v2034, 0.0
    %v2037 = vsel %vm1970, %v2036, 0.0
    %v2038 = vrot.slane %v2037, 4
    %v2039 = vadd.f32 %v2037, %v2038
    %v2040 = vrot.slane %v2039, 2
    %v2041 = vadd.f32 %v2039, %v2040
    %v2042 = vrot.slane %v2041, 1
    %v2043 = vadd.f32 %v2041, %v2042
    %2044 = vst.msk [vmem:[#allocation9 + $0x5] sm:$0x1] %vm1978, %v2043
    %2045 = vset.pattern.permute.xlu0 6
    %2046 = vperm.xlu0 %2045, %v1963
    %v2047 = vpop.permute.xlu0 %2046
    %v2049 = vsel %vm648, %v2047, 0.0
    %v2050 = vsel %vm1970, %v2049, 0.0
    %v2051 = vrot.slane %v2050, 4
    %v2052 = vadd.f32 %v2050, %v2051
    %v2053 = vrot.slane %v2052, 2
    %v2054 = vadd.f32 %v2052, %v2053
    %v2055 = vrot.slane %v2054, 1
    %v2056 = vadd.f32 %v2054, %v2055
    %2057 = vst.msk [vmem:[#allocation9 + $0x6] sm:$0x1] %vm1978, %v2056
    %2058 = vset.pattern.permute.xlu0 7
    %2059 = vperm.xlu0 %2058, %v1963
    %v2060 = vpop.permute.xlu0 %2059
    %v2062 = vsel %vm648, %v2060, 0.0
    %v2063 = vsel %vm1970, %v2062, 0.0
    %v2064 = vrot.slane %v2063, 4
    %v2065 = vadd.f32 %v2063, %v2064
    %v2066 = vrot.slane %v2065, 2
    %v2067 = vadd.f32 %v2065, %v2066
    %v2068 = vrot.slane %v2067, 1
    %v2069 = vadd.f32 %v2067, %v2068
    %2070 = vst.msk [vmem:[#allocation9 + $0x7] sm:$0x1] %vm1978, %v2069
    // Predicated region
    $region26: #{seq2seq_forward.1} parent=1 // pred_check
      _
    $region27: #{seq2seq_forward.1} parent=1 // pred_check_branch
      %2072 = sbr.rel (0) target = $region29
    $region28: #{seq2seq_forward.1} parent=1 // pred_region
      _
    $region29: #{seq2seq_forward.1} parent=1 // pred_fallthru
      _
    // Predicated region
    $region30: #{seq2seq_forward.1} parent=1 // pred_check
      _
    $region31: #{seq2seq_forward.1} parent=1 // pred_check_branch
      %2074 = sbr.rel (0) target = $region33
    $region32: #{seq2seq_forward.1} parent=1 // pred_region
      %s2076 = ssub.s32 128, 128
      %2077 = vsyncadd [#allocation6], %s2076
      %s2079 = sshll.u32 [#allocation9], 4
      %s2080 = int_to_ptr.vmem [resolvable:$true] %s2079
      %2082 = dma.vmem_to_hbm [thread:$0]  %s2080, 128, %s5, [#allocation6]
    $region33: #{seq2seq_forward.1} parent=1 // pred_fallthru
      _
    // Predicated region
    $region34: #{seq2seq_forward.1} parent=1 // pred_check
      _
    $region35: #{seq2seq_forward.1} parent=1 // pred_check_branch
      %2084 = sbr.rel (0) target = $region37
    $region36: #{seq2seq_forward.1} parent=1 // pred_region
      _
    $region37: #{seq2seq_forward.1} parent=1 // pred_fallthru
      _
    // Predicated region
    $region38: #{seq2seq_forward.1} parent=1 // pred_check
      _
    $region39: #{seq2seq_forward.1} parent=1 // pred_check_branch
      %2086 = sbr.rel (0) target = $region41
    $region40: #{seq2seq_forward.1} parent=1 // pred_region
      %2087 = dma.done [#allocation6], 128
    $region41: #{seq2seq_forward.1} parent=1 // pred_fallthru
      _
    %2088 = vsyncpa [#allocation5], 1
    %2089 = vsyncpa [#allocation8], 1
    %2090 = vsyncpa [#allocation6], 1

</llo_original>
